<compile_context>
chip_gen: v5e
topology: v5e:2x2
jax: 0.10.0
libtpu: 0.0.40
codegen_flags: <defaults>
</compile_context>

<pallas_src>
import functools

import jax
import jax.numpy as jnp
from jax.experimental import pallas as pl
from jax.experimental.pallas import tpu as pltpu


def _round_up(x, m):
    return (x + m - 1) // m * m


def _choose_block_v(vocab_size, hidden_size, weight_dtype):
    """Lane-dense vocab tile (multiple of 128).

    Sized so one (H, TV) w_out slab is ~4 MiB: double-buffered it stays well
    under every chip's scoped-VMEM default (16 MiB on v5e).  For large vocabs
    we keep >= ~4 grid steps so the HBM stream pipelines with the MXU.
    """
    itemsize = jax.dtypes.canonicalize_dtype(weight_dtype).itemsize
    v128 = _round_up(vocab_size, 128)
    max_tv = max(128, (4 * 1024 * 1024 // (hidden_size * itemsize)) // 128 * 128)
    if v128 <= max_tv:
        return v128
    return min(max_tv, _round_up(pl.cdiv(v128, 4), 128))


def gru_cell_kernel(x_ref, h_ref, w_ih_ref, w_hh_ref, b_gi_ref, b_hn_ref,
                    h_new_ref, h_new_wd_ref):
    """Single GRU step (PyTorch gate order [r | z | n] along the 3H axis).

    Emits h_new twice: f32 (returned to the caller) and pre-cast to the
    output-weight dtype (consumed by the vocab-tiled logits kernel), so the
    vocab loop never re-casts it.
    """
    H = h_ref.shape[1]
    wd = w_ih_ref.dtype
    x = x_ref[...]                                       # (B, H) f32
    h = h_ref[...]                                       # (B, H) f32
    gi = jnp.dot(x.astype(wd), w_ih_ref[...],
                 preferred_element_type=jnp.float32) + b_gi_ref[...]
    gh = jnp.dot(h.astype(wd), w_hh_ref[...],
                 preferred_element_type=jnp.float32)
    r = jax.nn.sigmoid(gi[:, :H] + gh[:, :H])
    z = jax.nn.sigmoid(gi[:, H:2 * H] + gh[:, H:2 * H])
    n = jnp.tanh(gi[:, 2 * H:] + r * (gh[:, 2 * H:] + b_hn_ref[...]))
    h_new = (1.0 - z) * n + z * h                        # (B, H) f32
    h_new_ref[...] = h_new
    h_new_wd_ref[...] = h_new.astype(h_new_wd_ref.dtype)


def logits_kernel(h_ref, w_out_ref, b_out_ref, out_ref):
    """One (B, TV) logits slab; vocab tiles are independent ('parallel')."""
    out_ref[...] = (jnp.dot(h_ref[...], w_out_ref[...],
                            preferred_element_type=jnp.float32)
                    + b_out_ref[...])


def pack_params(params, weight_dtype=jnp.bfloat16):
    """Kernel-ready weights: biases folded, vocab padded to the tile size,
    GRU/Linear weights cast to `weight_dtype` (bf16 default to halve the
    dominant w_out HBM stream; activations & accumulation stay f32).
    """
    # (Further byte reduction: int8 weight-only on v5e/v6e, fp8 on v7x, with a
    #  per-column scale folded into b_out - not implemented here.)
    H = params["w_ih"].shape[0]
    V = params["w_out"].shape[1]
    block_v = _choose_block_v(V, H, weight_dtype)
    V_pad = _round_up(V, block_v)

    b_ih, b_hh = params["b_ih"], params["b_hh"]
    # r/z biases are plain sums inside the sigmoid -> fold; b_hh_n stays
    # separate because r multiplies it (PyTorch GRU semantics).
    b_gi = jnp.concatenate([b_ih[:2 * H] + b_hh[:2 * H], b_ih[2 * H:]])
    return {
        "emb": params["emb"],
        "w_ih": params["w_ih"].astype(weight_dtype),
        "w_hh": params["w_hh"].astype(weight_dtype),
        "b_gi": b_gi.reshape(1, 3 * H).astype(jnp.float32),
        "b_hn": b_hh[2 * H:].reshape(1, H).astype(jnp.float32),
        "w_out": jnp.pad(params["w_out"],
                         ((0, 0), (0, V_pad - V))).astype(weight_dtype),
        "b_out": jnp.pad(params["b_out"],
                         (0, V_pad - V)).reshape(1, V_pad).astype(jnp.float32),
    }


@functools.partial(jax.jit, static_argnames=("vocab_size",))
def decoder_forward(tokens, hidden, packed, *, vocab_size):
    """tokens (B,) int; hidden (1,B,H) f32 -> (logits (B,V), hidden (1,B,H))."""
    B = tokens.shape[0]
    H = hidden.shape[-1]
    wd = packed["w_out"].dtype
    V_pad = packed["w_out"].shape[1]
    block_v = _choose_block_v(vocab_size, H, wd)
    assert V_pad % block_v == 0 and H % 128 == 0

    B_pad = _round_up(max(B, 8), 8)
    tok = tokens.astype(jnp.int32)
    h = hidden[0]                                          # squeeze GRU layer dim
    if B_pad != B:
        tok = jnp.pad(tok, (0, B_pad - B))
        h = jnp.pad(h, ((0, B_pad - B), (0, 0)))
    # Embedding lookup: gather only the B needed rows (no one-hot matmul, no
    # full-table DMA into a kernel).
    x = packed["emb"][tok].astype(jnp.float32)             # (B_pad, H)

    full2d = lambda i: (0, 0)

    # --- GRU cell: one step, everything VMEM-resident. -----------------------
    h_new, h_new_wd = pl.pallas_call(
        gru_cell_kernel,
        out_shape=(jax.ShapeDtypeStruct((B_pad, H), jnp.float32),
                   jax.ShapeDtypeStruct((B_pad, H), wd)),
        grid=(1,),
        in_specs=[
            pl.BlockSpec((B_pad, H), full2d),              # x (embedded tokens)
            pl.BlockSpec((B_pad, H), full2d),              # h (aliased to h_new)
            pl.BlockSpec((H, 3 * H), full2d),              # w_ih
            pl.BlockSpec((H, 3 * H), full2d),              # w_hh
            pl.BlockSpec((1, 3 * H), full2d),              # folded r/z/n input bias
            pl.BlockSpec((1, H), full2d),                  # b_hh_n
        ],
        out_specs=(
            pl.BlockSpec((B_pad, H), full2d),              # h_new f32
            pl.BlockSpec((B_pad, H), full2d),              # h_new in weight dtype
        ),
        input_output_aliases={1: 0},  # hidden updated in place (when B == B_pad)
        compiler_params=pltpu.CompilerParams(
            dimension_semantics=("arbitrary",)),
    )(x, h, packed["w_ih"], packed["w_hh"], packed["b_gi"], packed["b_hn"])

    # --- Output Linear: stream w_out HBM->VMEM in (H, TV) slabs. -------------
    vtile = lambda j: (0, j)
    logits_p = pl.pallas_call(
        logits_kernel,
        out_shape=jax.ShapeDtypeStruct((B_pad, V_pad), jnp.float32),
        grid=(V_pad // block_v,),
        in_specs=[
            pl.BlockSpec((B_pad, H), full2d),              # h_new (weight dtype)
            pl.BlockSpec((H, block_v), vtile),             # w_out tile (streamed)
            pl.BlockSpec((1, block_v), vtile),             # b_out tile
        ],
        out_specs=pl.BlockSpec((B_pad, block_v), vtile),   # lane-dense logits tile
        compiler_params=pltpu.CompilerParams(
            # Independent vocab tiles: megacore (v7x) may split them across TCs.
            dimension_semantics=("parallel",),
            vmem_limit_bytes=32 * 1024 * 1024),
    )(h_new_wd, packed["w_out"], packed["b_out"])

    return logits_p[:B, :vocab_size], h_new[None, :B, :]


def decoder_forward_ref(tokens, hidden, params):
    """Pure-JAX reference mirroring torch.nn.Embedding / GRU / Linear."""
    H = hidden.shape[-1]
    x = params["emb"][tokens]                              # (B, H)
    h = hidden[0]
    gi = x @ params["w_ih"] + params["b_ih"]
    gh = h @ params["w_hh"] + params["b_hh"]
    r = jax.nn.sigmoid(gi[:, :H] + gh[:, :H])
    z = jax.nn.sigmoid(gi[:, H:2 * H] + gh[:, H:2 * H])
    n = jnp.tanh(gi[:, 2 * H:] + r * gh[:, 2 * H:])
    h_new = (1.0 - z) * n + z * h
    out = h_new @ params["w_out"] + params["b_out"]
    return out, h_new[None, :, :]


def init_params(key, hidden_size, output_size):
    ks = jax.random.split(key, 7)
    s = 0.1
    return {
        # Embedding table (V, H)
        "emb": s * jax.random.normal(ks[0], (output_size, hidden_size), jnp.float32),
        # GRU weights pre-transposed to (in, out); gate order [r|z|n] along out.
        "w_ih": s * jax.random.normal(ks[1], (hidden_size, 3 * hidden_size), jnp.float32),
        "w_hh": s * jax.random.normal(ks[2], (hidden_size, 3 * hidden_size), jnp.float32),
        "b_ih": s * jax.random.normal(ks[3], (3 * hidden_size,), jnp.float32),
        "b_hh": s * jax.random.normal(ks[4], (3 * hidden_size,), jnp.float32),
        # Output Linear pre-transposed to (H, V)
        "w_out": s * jax.random.normal(ks[5], (hidden_size, output_size), jnp.float32),
        "b_out": s * jax.random.normal(ks[6], (output_size,), jnp.float32),
    }


if __name__ == "__main__":
    hidden_size = 256   # matches the PyTorch spec
    output_size = 10
    batch = 8

    key = jax.random.PRNGKey(0)
    k_par, k_tok, k_hid = jax.random.split(key, 3)

    params = init_params(k_par, hidden_size, output_size)
    tokens = jax.random.randint(k_tok, (batch,), 0, output_size, jnp.int32)
    hidden = jax.random.normal(k_hid, (1, batch, hidden_size), jnp.float32)

    out_ref, h_ref = decoder_forward_ref(tokens, hidden, params)

    # f32 weight path: exact parity with the reference.
    packed_f32 = pack_params(params, weight_dtype=jnp.float32)
    out, h_new = decoder_forward(tokens, hidden, packed_f32, vocab_size=output_size)
    out, h_new = jax.block_until_ready((out, h_new))
    assert out.shape == (batch, output_size)
    assert h_new.shape == (1, batch, hidden_size)
    assert jnp.allclose(out, out_ref, atol=1e-5, rtol=1e-5)
    assert jnp.allclose(h_new, h_ref, atol=1e-5, rtol=1e-5)

    # bf16 weight path (the production default): halves the dominant w_out HBM
    # stream; gate math / accumulation stay f32, so only a looser tolerance.
    packed_bf16 = pack_params(params)
    out_b, h_b = decoder_forward(tokens, hidden, packed_bf16, vocab_size=output_size)
    out_b, h_b = jax.block_until_ready((out_b, h_b))
    assert out_b.shape == (batch, output_size)
    assert h_b.shape == (1, batch, hidden_size)
    assert jnp.allclose(out_b, out_ref, atol=5e-2, rtol=5e-2)
    assert jnp.allclose(h_b, h_ref, atol=5e-2, rtol=5e-2)

    print("KERNEL_OK")
</pallas_src>

<mosaic_0001>
module attributes {stable_mosaic.version = 11 : i64} {
  func.func @logits_kernel(%arg0: i32, %arg1: memref<8x256xf32, #tpu.memory_space<vmem>>, %arg2: memref<256x128xf32, #tpu.memory_space<vmem>>, %arg3: memref<1x128xf32, #tpu.memory_space<vmem>>, %arg4: memref<8x128xf32, #tpu.memory_space<vmem>>) attributes {dimension_semantics = [#tpu.dimension_semantics<parallel>], iteration_bounds = array<i64: 1>, scalar_prefetch = 0 : i64, scratch_operands = 0 : i64, tpu.core_type = #tpu.core_type<tc>, window_params = [{pipeline_mode = #tpu.pipeline_mode<synchronous>, transform_indices = @transform_0, window_bounds = array<i64: 8, 256>}, {transform_indices = @transform_1, window_bounds = array<i64: 256, 128>}, {transform_indices = @transform_2, window_bounds = array<i64: 1, 128>}, {transform_indices = @transform_3, window_bounds = array<i64: 8, 128>}]} {
    %c0 = arith.constant 0 : index
    %c0_0 = arith.constant 0 : index
    %0 = vector.load %arg1[%c0, %c0_0] : memref<8x256xf32, #tpu.memory_space<vmem>>, vector<8x256xf32>
    %c0_1 = arith.constant 0 : index
    %c0_2 = arith.constant 0 : index
    %1 = vector.load %arg2[%c0_1, %c0_2] : memref<256x128xf32, #tpu.memory_space<vmem>>, vector<256x128xf32>
    %cst = arith.constant dense<0.000000e+00> : vector<8x128xf32>
    %2 = tpu.matmul %0, %1, %cst {dimension_numbers = #tpu.dot_dimension_numbers<[1], [0], [0], [1], [0, 0, 1, 1], [], []>} : vector<8x256xf32>, vector<256x128xf32>, vector<8x128xf32> -> vector<8x128xf32>
    %c0_3 = arith.constant 0 : index
    %c0_4 = arith.constant 0 : index
    %3 = vector.load %arg3[%c0_3, %c0_4] : memref<1x128xf32, #tpu.memory_space<vmem>>, vector<1x128xf32>
    %4 = vector.broadcast %3 : vector<1x128xf32> to vector<8x128xf32>
    %5 = arith.addf %2, %4 : vector<8x128xf32>
    %c0_5 = arith.constant 0 : index
    %c0_6 = arith.constant 0 : index
    %6 = vector.load %arg4[%c0_5, %c0_6] : memref<8x128xf32, #tpu.memory_space<vmem>>, vector<8x128xf32>
    tpu.vector_store %arg4[%c0_5, %c0_6], %5 {strides = array<i32>} : memref<8x128xf32, #tpu.memory_space<vmem>>, vector<8x128xf32>,
    return
  }
  func.func @transform_0(%arg0: i32) -> (i32, i32) {
    %c0_i32 = arith.constant 0 : i32
    %c0_i32_0 = arith.constant 0 : i32
    %c0_i32_1 = arith.constant 0 : i32
    return %c0_i32, %c0_i32_0 : i32, i32
  }
  func.func @transform_1(%arg0: i32) -> (i32, i32) {
    %c0_i32 = arith.constant 0 : i32
    %c0_i32_0 = arith.constant 0 : i32
    return %c0_i32, %arg0 : i32, i32
  }
  func.func @transform_2(%arg0: i32) -> (i32, i32) {
    %c0_i32 = arith.constant 0 : i32
    %c0_i32_0 = arith.constant 0 : i32
    return %c0_i32, %arg0 : i32, i32
  }
  func.func @transform_3(%arg0: i32) -> (i32, i32) {
    %c0_i32 = arith.constant 0 : i32
    %c0_i32_0 = arith.constant 0 : i32
    return %c0_i32, %arg0 : i32, i32
  }
}

module attributes {stable_mosaic.version = 11 : i64} {
  func.func @gru_cell_kernel(%arg0: i32, %arg1: memref<8x256xf32, #tpu.memory_space<vmem>>, %arg2: memref<8x256xf32, #tpu.memory_space<vmem>>, %arg3: memref<256x768xf32, #tpu.memory_space<vmem>>, %arg4: memref<256x768xf32, #tpu.memory_space<vmem>>, %arg5: memref<1x768xf32, #tpu.memory_space<vmem>>, %arg6: memref<1x256xf32, #tpu.memory_space<vmem>>, %arg7: memref<8x256xf32, #tpu.memory_space<vmem>>, %arg8: memref<8x256xf32, #tpu.memory_space<vmem>>) attributes {dimension_semantics = [#tpu.dimension_semantics<arbitrary>], iteration_bounds = array<i64: 1>, scalar_prefetch = 0 : i64, scratch_operands = 0 : i64, tpu.core_type = #tpu.core_type<tc>, window_params = [{pipeline_mode = #tpu.pipeline_mode<synchronous>, transform_indices = @transform_0, window_bounds = array<i64: 8, 256>}, {pipeline_mode = #tpu.pipeline_mode<synchronous>, transform_indices = @transform_1, window_bounds = array<i64: 8, 256>}, {pipeline_mode = #tpu.pipeline_mode<synchronous>, transform_indices = @transform_2, window_bounds = array<i64: 256, 768>}, {pipeline_mode = #tpu.pipeline_mode<synchronous>, transform_indices = @transform_3, window_bounds = array<i64: 256, 768>}, {pipeline_mode = #tpu.pipeline_mode<synchronous>, transform_indices = @transform_4, window_bounds = array<i64: 1, 768>}, {pipeline_mode = #tpu.pipeline_mode<synchronous>, transform_indices = @transform_5, window_bounds = array<i64: 1, 256>}, {pipeline_mode = #tpu.pipeline_mode<synchronous>, transform_indices = @transform_6, window_bounds = array<i64: 8, 256>}, {pipeline_mode = #tpu.pipeline_mode<synchronous>, transform_indices = @transform_7, window_bounds = array<i64: 8, 256>}]} {
    %c0 = arith.constant 0 : index
    %c0_0 = arith.constant 0 : index
    %0 = vector.load %arg1[%c0, %c0_0] : memref<8x256xf32, #tpu.memory_space<vmem>>, vector<8x256xf32>
    %c0_1 = arith.constant 0 : index
    %c0_2 = arith.constant 0 : index
    %1 = vector.load %arg2[%c0_1, %c0_2] : memref<8x256xf32, #tpu.memory_space<vmem>>, vector<8x256xf32>
    %c0_3 = arith.constant 0 : index
    %c0_4 = arith.constant 0 : index
    %2 = vector.load %arg3[%c0_3, %c0_4] : memref<256x768xf32, #tpu.memory_space<vmem>>, vector<256x768xf32>
    %cst = arith.constant dense<0.000000e+00> : vector<8x768xf32>
    %3 = tpu.matmul %0, %2, %cst {dimension_numbers = #tpu.dot_dimension_numbers<[1], [0], [0], [1], [0, 0, 1, 1], [], []>} : vector<8x256xf32>, vector<256x768xf32>, vector<8x768xf32> -> vector<8x768xf32>
    %c0_5 = arith.constant 0 : index
    %c0_6 = arith.constant 0 : index
    %4 = vector.load %arg5[%c0_5, %c0_6] : memref<1x768xf32, #tpu.memory_space<vmem>>, vector<1x768xf32>
    %5 = vector.broadcast %4 : vector<1x768xf32> to vector<8x768xf32>
    %6 = arith.addf %3, %5 : vector<8x768xf32>
    %c0_7 = arith.constant 0 : index
    %c0_8 = arith.constant 0 : index
    %7 = vector.load %arg4[%c0_7, %c0_8] : memref<256x768xf32, #tpu.memory_space<vmem>>, vector<256x768xf32>
    %cst_9 = arith.constant dense<0.000000e+00> : vector<8x768xf32>
    %8 = tpu.matmul %1, %7, %cst_9 {dimension_numbers = #tpu.dot_dimension_numbers<[1], [0], [0], [1], [0, 0, 1, 1], [], []>} : vector<8x256xf32>, vector<256x768xf32>, vector<8x768xf32> -> vector<8x768xf32>
    %9 = vector.extract_strided_slice %6 {offsets = [0, 0], sizes = [8, 256], strides = [1, 1]} : vector<8x768xf32> to vector<8x256xf32>
    %10 = vector.extract_strided_slice %8 {offsets = [0, 0], sizes = [8, 256], strides = [1, 1]} : vector<8x768xf32> to vector<8x256xf32>
    %11 = arith.addf %9, %10 : vector<8x256xf32>
    %12 = arith.negf %11 : vector<8x256xf32>
    %13 = math.exp %12 : vector<8x256xf32>
    %cst_10 = arith.constant 1.000000e+00 : f32
    %14 = vector.broadcast %cst_10 : f32 to vector<8x256xf32>
    %15 = arith.addf %14, %13 : vector<8x256xf32>
    %16 = arith.divf %14, %15 : vector<8x256xf32>
    %17 = vector.extract_strided_slice %6 {offsets = [0, 256], sizes = [8, 256], strides = [1, 1]} : vector<8x768xf32> to vector<8x256xf32>
    %18 = vector.extract_strided_slice %8 {offsets = [0, 256], sizes = [8, 256], strides = [1, 1]} : vector<8x768xf32> to vector<8x256xf32>
    %19 = arith.addf %17, %18 : vector<8x256xf32>
    %20 = arith.negf %19 : vector<8x256xf32>
    %21 = math.exp %20 : vector<8x256xf32>
    %cst_11 = arith.constant 1.000000e+00 : f32
    %22 = vector.broadcast %cst_11 : f32 to vector<8x256xf32>
    %23 = arith.addf %22, %21 : vector<8x256xf32>
    %24 = arith.divf %22, %23 : vector<8x256xf32>
    %25 = vector.extract_strided_slice %6 {offsets = [0, 512], sizes = [8, 256], strides = [1, 1]} : vector<8x768xf32> to vector<8x256xf32>
    %26 = vector.extract_strided_slice %8 {offsets = [0, 512], sizes = [8, 256], strides = [1, 1]} : vector<8x768xf32> to vector<8x256xf32>
    %c0_12 = arith.constant 0 : index
    %c0_13 = arith.constant 0 : index
    %27 = vector.load %arg6[%c0_12, %c0_13] : memref<1x256xf32, #tpu.memory_space<vmem>>, vector<1x256xf32>
    %28 = vector.broadcast %27 : vector<1x256xf32> to vector<8x256xf32>
    %29 = arith.addf %26, %28 : vector<8x256xf32>
    %30 = arith.mulf %16, %29 : vector<8x256xf32>
    %31 = arith.addf %25, %30 : vector<8x256xf32>
    %32 = math.tanh %31 : vector<8x256xf32>
    %cst_14 = arith.constant 1.000000e+00 : f32
    %33 = vector.broadcast %cst_14 : f32 to vector<8x256xf32>
    %34 = arith.subf %33, %24 : vector<8x256xf32>
    %35 = arith.mulf %34, %32 : vector<8x256xf32>
    %36 = arith.mulf %24, %1 : vector<8x256xf32>
    %37 = arith.addf %35, %36 : vector<8x256xf32>
    %c0_15 = arith.constant 0 : index
    %c0_16 = arith.constant 0 : index
    %38 = vector.load %arg7[%c0_15, %c0_16] : memref<8x256xf32, #tpu.memory_space<vmem>>, vector<8x256xf32>
    tpu.vector_store %arg7[%c0_15, %c0_16], %37 {strides = array<i32>} : memref<8x256xf32, #tpu.memory_space<vmem>>, vector<8x256xf32>,
    %c0_17 = arith.constant 0 : index
    %c0_18 = arith.constant 0 : index
    %39 = vector.load %arg8[%c0_17, %c0_18] : memref<8x256xf32, #tpu.memory_space<vmem>>, vector<8x256xf32>
    tpu.vector_store %arg8[%c0_17, %c0_18], %37 {strides = array<i32>} : memref<8x256xf32, #tpu.memory_space<vmem>>, vector<8x256xf32>,
    return
  }
  func.func @transform_0(%arg0: i32) -> (i32, i32) {
    %c0_i32 = arith.constant 0 : i32
    %c0_i32_0 = arith.constant 0 : i32
    %c0_i32_1 = arith.constant 0 : i32
    return %c0_i32, %c0_i32_0 : i32, i32
  }
  func.func @transform_1(%arg0: i32) -> (i32, i32) {
    %c0_i32 = arith.constant 0 : i32
    %c0_i32_0 = arith.constant 0 : i32
    %c0_i32_1 = arith.constant 0 : i32
    return %c0_i32, %c0_i32_0 : i32, i32
  }
  func.func @transform_2(%arg0: i32) -> (i32, i32) {
    %c0_i32 = arith.constant 0 : i32
    %c0_i32_0 = arith.constant 0 : i32
    %c0_i32_1 = arith.constant 0 : i32
    return %c0_i32, %c0_i32_0 : i32, i32
  }
  func.func @transform_3(%arg0: i32) -> (i32, i32) {
    %c0_i32 = arith.constant 0 : i32
    %c0_i32_0 = arith.constant 0 : i32
    %c0_i32_1 = arith.constant 0 : i32
    return %c0_i32, %c0_i32_0 : i32, i32
  }
  func.func @transform_4(%arg0: i32) -> (i32, i32) {
    %c0_i32 = arith.constant 0 : i32
    %c0_i32_0 = arith.constant 0 : i32
    %c0_i32_1 = arith.constant 0 : i32
    return %c0_i32, %c0_i32_0 : i32, i32
  }
  func.func @transform_5(%arg0: i32) -> (i32, i32) {
    %c0_i32 = arith.constant 0 : i32
    %c0_i32_0 = arith.constant 0 : i32
    %c0_i32_1 = arith.constant 0 : i32
    return %c0_i32, %c0_i32_0 : i32, i32
  }
  func.func @transform_6(%arg0: i32) -> (i32, i32) {
    %c0_i32 = arith.constant 0 : i32
    %c0_i32_0 = arith.constant 0 : i32
    %c0_i32_1 = arith.constant 0 : i32
    return %c0_i32, %c0_i32_0 : i32, i32
  }
  func.func @transform_7(%arg0: i32) -> (i32, i32) {
    %c0_i32 = arith.constant 0 : i32
    %c0_i32_0 = arith.constant 0 : i32
    %c0_i32_1 = arith.constant 0 : i32
    return %c0_i32, %c0_i32_0 : i32, i32
  }
}

</mosaic_0001>

<llo_original>
// kernel: decoder_forward.3
$region0: #{decoder_forward.3}
  #allocation0 [shape = 'u32[]', space=smem, size = 0x4, offset = 0x4, fixed_abs, tag = 'smem constant byte address 0x4 - core index']
  #allocation1 [shape = 'u32[72,128]{1,0:T(1,128)}', space=vmem, size = 0x9000, scoped, tag = 'internal scratch']
  %s0 = inlined_call_operand.vmem [shape: f32[8,256], index: 0, kind: input, shape index: {}]
  %s1 = inlined_call_operand.hbm [shape: f32[256,128], index: 1, kind: input, shape index: {}]
  %s2 = inlined_call_operand.vmem [shape: f32[1,128], index: 2, kind: input, shape index: {}]
  %s3 = inlined_call_operand.hbm [shape: f32[8,128], index: 3, kind: output, shape index: {}]
  %s4 = sld [smem:[#allocation0]]
  $region26: #{decoder_forward.3} parent=0
    _
  %s6 = ssub.s32 1, %s4
  %s7 = scalar_select 0, %s6, %s4
  $region1: #{decoder_forward.3} parent=0
    #allocation2 [shape = 'u8[131072]{0}', space=vmem, size = 0x20000, scoped, tag = 'input window, operand 1, single buffered']
    #allocation3 [shape = 's32[1]{0}', space=sflag, size = 0x4, scoped, tag = 'scoped memory for decoder_forward.3']
    #allocation4 [shape = 's32[1]{0}', space=sflag, size = 0x4, scoped, tag = 'scoped memory for decoder_forward.3']
    #allocation5 [shape = 'u8[4096]{0}', space=vmem, size = 0x1000, scoped, tag = 'output window, operand 0, single buffered']
    %8 = vsyncpa [#allocation3], 0
    %9 = vsyncpa [#allocation4], 0
    // Predicated region
    $region2: #{decoder_forward.3} parent=1 // pred_check
      _
    $region3: #{decoder_forward.3} parent=1 // pred_check_branch
      %11 = sbr.rel (0) target = $region5
    $region4: #{decoder_forward.3} parent=1 // pred_region
      _
    $region5: #{decoder_forward.3} parent=1 // pred_fallthru
      _
    // Predicated region
    $region6: #{decoder_forward.3} parent=1 // pred_check
      _
    $region7: #{decoder_forward.3} parent=1 // pred_check_branch
      %13 = sbr.rel (0) target = $region9
    $region8: #{decoder_forward.3} parent=1 // pred_region
      %15 = vsyncadd [#allocation3], 0
      %s16 = sshll.u32 %s1, 4
      %s17 = int_to_ptr.hbm [resolvable:$true] %s16
      %s18 = sshll.u32 [#allocation2], 4
      %s19 = int_to_ptr.vmem [resolvable:$true] %s18
      %24 = dma.hbm_to_vmem [thread:$0]  %s17, 4096, %s19, [#allocation3], 128, 128, 8
    $region9: #{decoder_forward.3} parent=1 // pred_fallthru
      _
    // Predicated region
    $region10: #{decoder_forward.3} parent=1 // pred_check
      _
    $region11: #{decoder_forward.3} parent=1 // pred_check_branch
      %26 = sbr.rel (0) target = $region13
    $region12: #{decoder_forward.3} parent=1 // pred_region
      _
    $region13: #{decoder_forward.3} parent=1 // pred_fallthru
      _
    // Predicated region
    $region14: #{decoder_forward.3} parent=1 // pred_check
      _
    $region15: #{decoder_forward.3} parent=1 // pred_check_branch
      %28 = sbr.rel (0) target = $region17
    $region16: #{decoder_forward.3} parent=1 // pred_region
      %30 = dma.done [#allocation3], 4096
    $region17: #{decoder_forward.3} parent=1 // pred_fallthru
      _
    %v31 = vld [vmem:[%s0] sm:$0xff]
    %v32 = vld [vmem:[%s0 + $0x8] sm:$0xff]
    %v33 = vld [vmem:[#allocation2] sm:$0xff]
    %v34 = vld [vmem:[#allocation2 + $0x8] sm:$0xff]
    %v35 = vld [vmem:[#allocation2 + $0x10] sm:$0xff]
    %v36 = vld [vmem:[#allocation2 + $0x18] sm:$0xff]
    %v37 = vld [vmem:[#allocation2 + $0x20] sm:$0xff]
    %v38 = vld [vmem:[#allocation2 + $0x28] sm:$0xff]
    %v39 = vld [vmem:[#allocation2 + $0x30] sm:$0xff]
    %v40 = vld [vmem:[#allocation2 + $0x38] sm:$0xff]
    %v41 = vld [vmem:[#allocation2 + $0x40] sm:$0xff]
    %v42 = vld [vmem:[#allocation2 + $0x48] sm:$0xff]
    %v43 = vld [vmem:[#allocation2 + $0x50] sm:$0xff]
    %v44 = vld [vmem:[#allocation2 + $0x58] sm:$0xff]
    %v45 = vld [vmem:[#allocation2 + $0x60] sm:$0xff]
    %v46 = vld [vmem:[#allocation2 + $0x68] sm:$0xff]
    %v47 = vld [vmem:[#allocation2 + $0x70] sm:$0xff]
    %v48 = vld [vmem:[#allocation2 + $0x78] sm:$0xff]
    %v49 = vld [vmem:[#allocation2 + $0x80] sm:$0xff]
    %v50 = vld [vmem:[#allocation2 + $0x88] sm:$0xff]
    %v51 = vld [vmem:[#allocation2 + $0x90] sm:$0xff]
    %v52 = vld [vmem:[#allocation2 + $0x98] sm:$0xff]
    %v53 = vld [vmem:[#allocation2 + $0xa0] sm:$0xff]
    %v54 = vld [vmem:[#allocation2 + $0xa8] sm:$0xff]
    %v55 = vld [vmem:[#allocation2 + $0xb0] sm:$0xff]
    %v56 = vld [vmem:[#allocation2 + $0xb8] sm:$0xff]
    %v57 = vld [vmem:[#allocation2 + $0xc0] sm:$0xff]
    %v58 = vld [vmem:[#allocation2 + $0xc8] sm:$0xff]
    %v59 = vld [vmem:[#allocation2 + $0xd0] sm:$0xff]
    %v60 = vld [vmem:[#allocation2 + $0xd8] sm:$0xff]
    %v61 = vld [vmem:[#allocation2 + $0xe0] sm:$0xff]
    %v62 = vld [vmem:[#allocation2 + $0xe8] sm:$0xff]
    %v63 = vld [vmem:[#allocation2 + $0xf0] sm:$0xff]
    %v64 = vld [vmem:[#allocation2 + $0xf8] sm:$0xff]
    %v65 = vld [vmem:[%s2] sm:$0x1]
    %v67 = vperm.slane %v65, 0
    %69 = vmatpush.msra.mxu0 %v48
    %70 = vmatpush.msra.mxu0 %v47
    %71 = vmatpush.msra.mxu0 %v46
    %72 = vmatpush.msra.mxu0 %v45
    %73 = vmatpush.msra.mxu0 %v44
    %74 = vmatpush.msra.mxu0 %v43
    %75 = vmatpush.msra.mxu0 %v42
    %76 = vmatpush.msra.mxu0 %v41
    %77 = vmatpush.msra.mxu0 %v40
    %78 = vmatpush.msra.mxu0 %v39
    %79 = vmatpush.msra.mxu0 %v38
    %80 = vmatpush.msra.mxu0 %v37
    %81 = vmatpush.msra.mxu0 %v36
    %82 = vmatpush.msra.mxu0 %v35
    %83 = vmatpush.msra.mxu0 %v34
    %84 = vmatpush.msra.mxu0 %v33
    %85 = vmatmul.f32.gmra.mxu0 %v31
    %v86 = vpop.f32.mrf.mxu0
    %v87 = vadd.f32 %v67, %v86
    %88 = vdwg.mxu0
    %89 = vmatpush.msra.mxu0 %v64
    %90 = vmatpush.msra.mxu0 %v63
    %91 = vmatpush.msra.mxu0 %v62
    %92 = vmatpush.msra.mxu0 %v61
    %93 = vmatpush.msra.mxu0 %v60
    %94 = vmatpush.msra.mxu0 %v59
    %95 = vmatpush.msra.mxu0 %v58
    %96 = vmatpush.msra.mxu0 %v57
    %97 = vmatpush.msra.mxu0 %v56
    %98 = vmatpush.msra.mxu0 %v55
    %99 = vmatpush.msra.mxu0 %v54
    %100 = vmatpush.msra.mxu0 %v53
    %101 = vmatpush.msra.mxu0 %v52
    %102 = vmatpush.msra.mxu0 %v51
    %103 = vmatpush.msra.mxu0 %v50
    %104 = vmatpush.msra.mxu0 %v49
    %105 = vmatmul.f32.gmra.mxu0 %v32
    %v106 = vpop.f32.mrf.mxu0
    %v107 = vadd.f32 %v87, %v106
    %108 = vdwg.mxu0
    %109 = vst [vmem:[#allocation5] sm:$0xff] %v107
    // Predicated region
    $region18: #{decoder_forward.3} parent=1 // pred_check
      _
    $region19: #{decoder_forward.3} parent=1 // pred_check_branch
      %111 = sbr.rel (0) target = $region21
    $region20: #{decoder_forward.3} parent=1 // pred_region
      %113 = vsyncadd [#allocation4], 0
      %s115 = sshll.u32 [#allocation5], 4
      %s116 = int_to_ptr.vmem [resolvable:$true] %s115
      %s117 = sshll.u32 %s3, 4
      %s118 = int_to_ptr.hbm [resolvable:$true] %s117
      %120 = dma.vmem_to_hbm [thread:$0]  %s116, 128, %s118, [#allocation4]
    $region21: #{decoder_forward.3} parent=1 // pred_fallthru
      _
    // Predicated region
    $region22: #{decoder_forward.3} parent=1 // pred_check
      _
    $region23: #{decoder_forward.3} parent=1 // pred_check_branch
      %122 = sbr.rel (0) target = $region25
    $region24: #{decoder_forward.3} parent=1 // pred_region
      %124 = dma.done [#allocation4], 128
    $region25: #{decoder_forward.3} parent=1 // pred_fallthru
      _
    %125 = vsyncpa [#allocation3], 1
    %126 = vsyncpa [#allocation4], 1

// kernel: decoder_forward.2
$region0: #{decoder_forward.2}
  #allocation0 [shape = 'u32[]', space=smem, size = 0x4, offset = 0x4, fixed_abs, tag = 'smem constant byte address 0x4 - core index']
  #allocation1 [shape = 'u32[72,128]{1,0:T(1,128)}', space=vmem, size = 0x9000, scoped, tag = 'internal scratch']
  %s0 = inlined_call_operand.vmem [shape: f32[8,256], index: 0, kind: input, shape index: {}]
  %s1 = inlined_call_operand.vmem [shape: f32[8,256], index: 1, kind: input, shape index: {}, may-alias: {1,6}]
  %s2 = inlined_call_operand.hbm [shape: f32[256,768], index: 2, kind: input, shape index: {}]
  %s3 = inlined_call_operand.hbm [shape: f32[256,768], index: 3, kind: input, shape index: {}]
  %s4 = inlined_call_operand.vmem [shape: f32[1,768], index: 4, kind: input, shape index: {}]
  %s5 = inlined_call_operand.vmem [shape: f32[1,256], index: 5, kind: input, shape index: {}]
  %s6 = inlined_call_operand.vmem [shape: f32[8,256], index: 6, kind: output, shape index: {0}, may-alias: {1,6}]
  %s7 = inlined_call_operand.vmem [shape: f32[8,256], index: 7, kind: output, shape index: {1}]
  %8 = xla_tuple %s6, %s7
  %s9 = sld [smem:[#allocation0]]
  $region50: #{decoder_forward.2} parent=0
    _
  %s11 = ssub.s32 1, %s9
  %s12 = scalar_select 0, %s11, %s9
  $region1: #{decoder_forward.2} parent=0
    #allocation2 [shape = 'u8[786432]{0}', space=vmem, size = 0xc0000, scoped, tag = 'input window, operand 2, single buffered']
    #allocation3 [shape = 's32[1]{0}', space=sflag, size = 0x4, scoped, tag = 'scoped memory for decoder_forward.2']
    #allocation4 [shape = 'u8[786432]{0}', space=vmem, size = 0xc0000, scoped, tag = 'input window, operand 3, single buffered']
    #allocation5 [shape = 's32[1]{0}', space=sflag, size = 0x4, scoped, tag = 'scoped memory for decoder_forward.2']
    %13 = vsyncpa [#allocation3], 0
    %14 = vsyncpa [#allocation5], 0
    // Predicated region
    $region2: #{decoder_forward.2} parent=1 // pred_check
      _
    $region3: #{decoder_forward.2} parent=1 // pred_check_branch
      %16 = sbr.rel (0) target = $region5
    $region4: #{decoder_forward.2} parent=1 // pred_region
      _
    $region5: #{decoder_forward.2} parent=1 // pred_fallthru
      _
    // Predicated region
    $region6: #{decoder_forward.2} parent=1 // pred_check
      _
    $region7: #{decoder_forward.2} parent=1 // pred_check_branch
      %18 = sbr.rel (0) target = $region9
    $region8: #{decoder_forward.2} parent=1 // pred_region
      _
    $region9: #{decoder_forward.2} parent=1 // pred_fallthru
      _
    // Predicated region
    $region10: #{decoder_forward.2} parent=1 // pred_check
      _
    $region11: #{decoder_forward.2} parent=1 // pred_check_branch
      %20 = sbr.rel (0) target = $region13
    $region12: #{decoder_forward.2} parent=1 // pred_region
      %22 = vsyncadd [#allocation3], 0
      %s23 = sshll.u32 %s2, 4
      %s24 = int_to_ptr.hbm [resolvable:$true] %s23
      %s25 = sshll.u32 [#allocation2], 4
      %s26 = int_to_ptr.vmem [resolvable:$true] %s25
      %31 = dma.hbm_to_vmem [thread:$0]  %s24, 24576, %s26, [#allocation3], 768, 768, 48
    $region13: #{decoder_forward.2} parent=1 // pred_fallthru
      _
    // Predicated region
    $region14: #{decoder_forward.2} parent=1 // pred_check
      _
    $region15: #{decoder_forward.2} parent=1 // pred_check_branch
      %33 = sbr.rel (0) target = $region17
    $region16: #{decoder_forward.2} parent=1 // pred_region
      %35 = vsyncadd [#allocation5], 0
      %s36 = sshll.u32 %s3, 4
      %s37 = int_to_ptr.hbm [resolvable:$true] %s36
      %s38 = sshll.u32 [#allocation4], 4
      %s39 = int_to_ptr.vmem [resolvable:$true] %s38
      %44 = dma.hbm_to_vmem [thread:$0]  %s37, 24576, %s39, [#allocation5], 768, 768, 48
    $region17: #{decoder_forward.2} parent=1 // pred_fallthru
      _
    // Predicated region
    $region18: #{decoder_forward.2} parent=1 // pred_check
      _
    $region19: #{decoder_forward.2} parent=1 // pred_check_branch
      %46 = sbr.rel (0) target = $region21
    $region20: #{decoder_forward.2} parent=1 // pred_region
      _
    $region21: #{decoder_forward.2} parent=1 // pred_fallthru
      _
    // Predicated region
    $region22: #{decoder_forward.2} parent=1 // pred_check
      _
    $region23: #{decoder_forward.2} parent=1 // pred_check_branch
      %48 = sbr.rel (0) target = $region25
    $region24: #{decoder_forward.2} parent=1 // pred_region
      _
    $region25: #{decoder_forward.2} parent=1 // pred_fallthru
      _
    // Predicated region
    $region26: #{decoder_forward.2} parent=1 // pred_check
      _
    $region27: #{decoder_forward.2} parent=1 // pred_check_branch
      %50 = sbr.rel (0) target = $region29
    $region28: #{decoder_forward.2} parent=1 // pred_region
      %52 = dma.done [#allocation3], 24576
    $region29: #{decoder_forward.2} parent=1 // pred_fallthru
      _
    // Predicated region
    $region30: #{decoder_forward.2} parent=1 // pred_check
      _
    $region31: #{decoder_forward.2} parent=1 // pred_check_branch
      %54 = sbr.rel (0) target = $region33
    $region32: #{decoder_forward.2} parent=1 // pred_region
      %56 = dma.done [#allocation5], 24576
    $region33: #{decoder_forward.2} parent=1 // pred_fallthru
      _
    %v57 = vld [vmem:[%s0] sm:$0xff]
    %v58 = vld [vmem:[%s0 + $0x8] sm:$0xff]
    %v59 = vld [vmem:[%s1] sm:$0xff]
    %v60 = vld [vmem:[%s1 + $0x8] sm:$0xff]
    %v61 = vld [vmem:[#allocation2] sm:$0xff]
    %v62 = vld [vmem:[#allocation2 + $0x8] sm:$0xff]
    %v63 = vld [vmem:[#allocation2 + $0x10] sm:$0xff]
    %v64 = vld [vmem:[#allocation2 + $0x18] sm:$0xff]
    %v65 = vld [vmem:[#allocation2 + $0x20] sm:$0xff]
    %v66 = vld [vmem:[#allocation2 + $0x28] sm:$0xff]
    %v67 = vld [vmem:[#allocation2 + $0x30] sm:$0xff]
    %v68 = vld [vmem:[#allocation2 + $0x38] sm:$0xff]
    %v69 = vld [vmem:[#allocation2 + $0x40] sm:$0xff]
    %v70 = vld [vmem:[#allocation2 + $0x48] sm:$0xff]
    %v71 = vld [vmem:[#allocation2 + $0x50] sm:$0xff]
    %v72 = vld [vmem:[#allocation2 + $0x58] sm:$0xff]
    %v73 = vld [vmem:[#allocation2 + $0x60] sm:$0xff]
    %v74 = vld [vmem:[#allocation2 + $0x68] sm:$0xff]
    %v75 = vld [vmem:[#allocation2 + $0x70] sm:$0xff]
    %v76 = vld [vmem:[#allocation2 + $0x78] sm:$0xff]
    %v77 = vld [vmem:[#allocation2 + $0x80] sm:$0xff]
    %v78 = vld [vmem:[#allocation2 + $0x88] sm:$0xff]
    %v79 = vld [vmem:[#allocation2 + $0x90] sm:$0xff]
    %v80 = vld [vmem:[#allocation2 + $0x98] sm:$0xff]
    %v81 = vld [vmem:[#allocation2 + $0xa0] sm:$0xff]
    %v82 = vld [vmem:[#allocation2 + $0xa8] sm:$0xff]
    %v83 = vld [vmem:[#allocation2 + $0xb0] sm:$0xff]
    %v84 = vld [vmem:[#allocation2 + $0xb8] sm:$0xff]
    %v85 = vld [vmem:[#allocation2 + $0xc0] sm:$0xff]
    %v86 = vld [vmem:[#allocation2 + $0xc8] sm:$0xff]
    %v87 = vld [vmem:[#allocation2 + $0xd0] sm:$0xff]
    %v88 = vld [vmem:[#allocation2 + $0xd8] sm:$0xff]
    %v89 = vld [vmem:[#allocation2 + $0xe0] sm:$0xff]
    %v90 = vld [vmem:[#allocation2 + $0xe8] sm:$0xff]
    %v91 = vld [vmem:[#allocation2 + $0xf0] sm:$0xff]
    %v92 = vld [vmem:[#allocation2 + $0xf8] sm:$0xff]
    %v93 = vld [vmem:[#allocation2 + $0x100] sm:$0xff]
    %v94 = vld [vmem:[#allocation2 + $0x108] sm:$0xff]
    %v95 = vld [vmem:[#allocation2 + $0x110] sm:$0xff]
    %v96 = vld [vmem:[#allocation2 + $0x118] sm:$0xff]
    %v97 = vld [vmem:[#allocation2 + $0x120] sm:$0xff]
    %v98 = vld [vmem:[#allocation2 + $0x128] sm:$0xff]
    %v99 = vld [vmem:[#allocation2 + $0x130] sm:$0xff]
    %v100 = vld [vmem:[#allocation2 + $0x138] sm:$0xff]
    %v101 = vld [vmem:[#allocation2 + $0x140] sm:$0xff]
    %v102 = vld [vmem:[#allocation2 + $0x148] sm:$0xff]
    %v103 = vld [vmem:[#allocation2 + $0x150] sm:$0xff]
    %v104 = vld [vmem:[#allocation2 + $0x158] sm:$0xff]
    %v105 = vld [vmem:[#allocation2 + $0x160] sm:$0xff]
    %v106 = vld [vmem:[#allocation2 + $0x168] sm:$0xff]
    %v107 = vld [vmem:[#allocation2 + $0x170] sm:$0xff]
    %v108 = vld [vmem:[#allocation2 + $0x178] sm:$0xff]
    %v109 = vld [vmem:[#allocation2 + $0x180] sm:$0xff]
    %v110 = vld [vmem:[#allocation2 + $0x188] sm:$0xff]
    %v111 = vld [vmem:[#allocation2 + $0x190] sm:$0xff]
    %v112 = vld [vmem:[#allocation2 + $0x198] sm:$0xff]
    %v113 = vld [vmem:[#allocation2 + $0x1a0] sm:$0xff]
    %v114 = vld [vmem:[#allocation2 + $0x1a8] sm:$0xff]
    %v115 = vld [vmem:[#allocation2 + $0x1b0] sm:$0xff]
    %v116 = vld [vmem:[#allocation2 + $0x1b8] sm:$0xff]
    %v117 = vld [vmem:[#allocation2 + $0x1c0] sm:$0xff]
    %v118 = vld [vmem:[#allocation2 + $0x1c8] sm:$0xff]
    %v119 = vld [vmem:[#allocation2 + $0x1d0] sm:$0xff]
    %v120 = vld [vmem:[#allocation2 + $0x1d8] sm:$0xff]
    %v121 = vld [vmem:[#allocation2 + $0x1e0] sm:$0xff]
    %v122 = vld [vmem:[#allocation2 + $0x1e8] sm:$0xff]
    %v123 = vld [vmem:[#allocation2 + $0x1f0] sm:$0xff]
    %v124 = vld [vmem:[#allocation2 + $0x1f8] sm:$0xff]
    %v125 = vld [vmem:[#allocation2 + $0x200] sm:$0xff]
    %v126 = vld [vmem:[#allocation2 + $0x208] sm:$0xff]
    %v127 = vld [vmem:[#allocation2 + $0x210] sm:$0xff]
    %v128 = vld [vmem:[#allocation2 + $0x218] sm:$0xff]
    %v129 = vld [vmem:[#allocation2 + $0x220] sm:$0xff]
    %v130 = vld [vmem:[#allocation2 + $0x228] sm:$0xff]
    %v131 = vld [vmem:[#allocation2 + $0x230] sm:$0xff]
    %v132 = vld [vmem:[#allocation2 + $0x238] sm:$0xff]
    %v133 = vld [vmem:[#allocation2 + $0x240] sm:$0xff]
    %v134 = vld [vmem:[#allocation2 + $0x248] sm:$0xff]
    %v135 = vld [vmem:[#allocation2 + $0x250] sm:$0xff]
    %v136 = vld [vmem:[#allocation2 + $0x258] sm:$0xff]
    %v137 = vld [vmem:[#allocation2 + $0x260] sm:$0xff]
    %v138 = vld [vmem:[#allocation2 + $0x268] sm:$0xff]
    %v139 = vld [vmem:[#allocation2 + $0x270] sm:$0xff]
    %v140 = vld [vmem:[#allocation2 + $0x278] sm:$0xff]
    %v141 = vld [vmem:[#allocation2 + $0x280] sm:$0xff]
    %v142 = vld [vmem:[#allocation2 + $0x288] sm:$0xff]
    %v143 = vld [vmem:[#allocation2 + $0x290] sm:$0xff]
    %v144 = vld [vmem:[#allocation2 + $0x298] sm:$0xff]
    %v145 = vld [vmem:[#allocation2 + $0x2a0] sm:$0xff]
    %v146 = vld [vmem:[#allocation2 + $0x2a8] sm:$0xff]
    %v147 = vld [vmem:[#allocation2 + $0x2b0] sm:$0xff]
    %v148 = vld [vmem:[#allocation2 + $0x2b8] sm:$0xff]
    %v149 = vld [vmem:[#allocation2 + $0x2c0] sm:$0xff]
    %v150 = vld [vmem:[#allocation2 + $0x2c8] sm:$0xff]
    %v151 = vld [vmem:[#allocation2 + $0x2d0] sm:$0xff]
    %v152 = vld [vmem:[#allocation2 + $0x2d8] sm:$0xff]
    %v153 = vld [vmem:[#allocation2 + $0x2e0] sm:$0xff]
    %v154 = vld [vmem:[#allocation2 + $0x2e8] sm:$0xff]
    %v155 = vld [vmem:[#allocation2 + $0x2f0] sm:$0xff]
    %v156 = vld [vmem:[#allocation2 + $0x2f8] sm:$0xff]
    %v157 = vld [vmem:[#allocation2 + $0x300] sm:$0xff]
    %v158 = vld [vmem:[#allocation2 + $0x308] sm:$0xff]
    %v159 = vld [vmem:[#allocation2 + $0x310] sm:$0xff]
    %v160 = vld [vmem:[#allocation2 + $0x318] sm:$0xff]
    %v161 = vld [vmem:[#allocation2 + $0x320] sm:$0xff]
    %v162 = vld [vmem:[#allocation2 + $0x328] sm:$0xff]
    %v163 = vld [vmem:[#allocation2 + $0x330] sm:$0xff]
    %v164 = vld [vmem:[#allocation2 + $0x338] sm:$0xff]
    %v165 = vld [vmem:[#allocation2 + $0x340] sm:$0xff]
    %v166 = vld [vmem:[#allocation2 + $0x348] sm:$0xff]
    %v167 = vld [vmem:[#allocation2 + $0x350] sm:$0xff]
    %v168 = vld [vmem:[#allocation2 + $0x358] sm:$0xff]
    %v169 = vld [vmem:[#allocation2 + $0x360] sm:$0xff]
    %v170 = vld [vmem:[#allocation2 + $0x368] sm:$0xff]
    %v171 = vld [vmem:[#allocation2 + $0x370] sm:$0xff]
    %v172 = vld [vmem:[#allocation2 + $0x378] sm:$0xff]
    %v173 = vld [vmem:[#allocation2 + $0x380] sm:$0xff]
    %v174 = vld [vmem:[#allocation2 + $0x388] sm:$0xff]
    %v175 = vld [vmem:[#allocation2 + $0x390] sm:$0xff]
    %v176 = vld [vmem:[#allocation2 + $0x398] sm:$0xff]
    %v177 = vld [vmem:[#allocation2 + $0x3a0] sm:$0xff]
    %v178 = vld [vmem:[#allocation2 + $0x3a8] sm:$0xff]
    %v179 = vld [vmem:[#allocation2 + $0x3b0] sm:$0xff]
    %v180 = vld [vmem:[#allocation2 + $0x3b8] sm:$0xff]
    %v181 = vld [vmem:[#allocation2 + $0x3c0] sm:$0xff]
    %v182 = vld [vmem:[#allocation2 + $0x3c8] sm:$0xff]
    %v183 = vld [vmem:[#allocation2 + $0x3d0] sm:$0xff]
    %v184 = vld [vmem:[#allocation2 + $0x3d8] sm:$0xff]
    %v185 = vld [vmem:[#allocation2 + $0x3e0] sm:$0xff]
    %v186 = vld [vmem:[#allocation2 + $0x3e8] sm:$0xff]
    %v187 = vld [vmem:[#allocation2 + $0x3f0] sm:$0xff]
    %v188 = vld [vmem:[#allocation2 + $0x3f8] sm:$0xff]
    %v189 = vld [vmem:[#allocation2 + $0x400] sm:$0xff]
    %v190 = vld [vmem:[#allocation2 + $0x408] sm:$0xff]
    %v191 = vld [vmem:[#allocation2 + $0x410] sm:$0xff]
    %v192 = vld [vmem:[#allocation2 + $0x418] sm:$0xff]
    %v193 = vld [vmem:[#allocation2 + $0x420] sm:$0xff]
    %v194 = vld [vmem:[#allocation2 + $0x428] sm:$0xff]
    %v195 = vld [vmem:[#allocation2 + $0x430] sm:$0xff]
    %v196 = vld [vmem:[#allocation2 + $0x438] sm:$0xff]
    %v197 = vld [vmem:[#allocation2 + $0x440] sm:$0xff]
    %v198 = vld [vmem:[#allocation2 + $0x448] sm:$0xff]
    %v199 = vld [vmem:[#allocation2 + $0x450] sm:$0xff]
    %v200 = vld [vmem:[#allocation2 + $0x458] sm:$0xff]
    %v201 = vld [vmem:[#allocation2 + $0x460] sm:$0xff]
    %v202 = vld [vmem:[#allocation2 + $0x468] sm:$0xff]
    %v203 = vld [vmem:[#allocation2 + $0x470] sm:$0xff]
    %v204 = vld [vmem:[#allocation2 + $0x478] sm:$0xff]
    %v205 = vld [vmem:[#allocation2 + $0x480] sm:$0xff]
    %v206 = vld [vmem:[#allocation2 + $0x488] sm:$0xff]
    %v207 = vld [vmem:[#allocation2 + $0x490] sm:$0xff]
    %v208 = vld [vmem:[#allocation2 + $0x498] sm:$0xff]
    %v209 = vld [vmem:[#allocation2 + $0x4a0] sm:$0xff]
    %v210 = vld [vmem:[#allocation2 + $0x4a8] sm:$0xff]
    %v211 = vld [vmem:[#allocation2 + $0x4b0] sm:$0xff]
    %v212 = vld [vmem:[#allocation2 + $0x4b8] sm:$0xff]
    %v213 = vld [vmem:[#allocation2 + $0x4c0] sm:$0xff]
    %v214 = vld [vmem:[#allocation2 + $0x4c8] sm:$0xff]
    %v215 = vld [vmem:[#allocation2 + $0x4d0] sm:$0xff]
    %v216 = vld [vmem:[#allocation2 + $0x4d8] sm:$0xff]
    %v217 = vld [vmem:[#allocation2 + $0x4e0] sm:$0xff]
    %v218 = vld [vmem:[#allocation2 + $0x4e8] sm:$0xff]
    %v219 = vld [vmem:[#allocation2 + $0x4f0] sm:$0xff]
    %v220 = vld [vmem:[#allocation2 + $0x4f8] sm:$0xff]
    %v221 = vld [vmem:[#allocation2 + $0x500] sm:$0xff]
    %v222 = vld [vmem:[#allocation2 + $0x508] sm:$0xff]
    %v223 = vld [vmem:[#allocation2 + $0x510] sm:$0xff]
    %v224 = vld [vmem:[#allocation2 + $0x518] sm:$0xff]
    %v225 = vld [vmem:[#allocation2 + $0x520] sm:$0xff]
    %v226 = vld [vmem:[#allocation2 + $0x528] sm:$0xff]
    %v227 = vld [vmem:[#allocation2 + $0x530] sm:$0xff]
    %v228 = vld [vmem:[#allocation2 + $0x538] sm:$0xff]
    %v229 = vld [vmem:[#allocation2 + $0x540] sm:$0xff]
    %v230 = vld [vmem:[#allocation2 + $0x548] sm:$0xff]
    %v231 = vld [vmem:[#allocation2 + $0x550] sm:$0xff]
    %v232 = vld [vmem:[#allocation2 + $0x558] sm:$0xff]
    %v233 = vld [vmem:[#allocation2 + $0x560] sm:$0xff]
    %v234 = vld [vmem:[#allocation2 + $0x568] sm:$0xff]
    %v235 = vld [vmem:[#allocation2 + $0x570] sm:$0xff]
    %v236 = vld [vmem:[#allocation2 + $0x578] sm:$0xff]
    %v237 = vld [vmem:[#allocation2 + $0x580] sm:$0xff]
    %v238 = vld [vmem:[#allocation2 + $0x588] sm:$0xff]
    %v239 = vld [vmem:[#allocation2 + $0x590] sm:$0xff]
    %v240 = vld [vmem:[#allocation2 + $0x598] sm:$0xff]
    %v241 = vld [vmem:[#allocation2 + $0x5a0] sm:$0xff]
    %v242 = vld [vmem:[#allocation2 + $0x5a8] sm:$0xff]
    %v243 = vld [vmem:[#allocation2 + $0x5b0] sm:$0xff]
    %v244 = vld [vmem:[#allocation2 + $0x5b8] sm:$0xff]
    %v245 = vld [vmem:[#allocation2 + $0x5c0] sm:$0xff]
    %v246 = vld [vmem:[#allocation2 + $0x5c8] sm:$0xff]
    %v247 = vld [vmem:[#allocation2 + $0x5d0] sm:$0xff]
    %v248 = vld [vmem:[#allocation2 + $0x5d8] sm:$0xff]
    %v249 = vld [vmem:[#allocation2 + $0x5e0] sm:$0xff]
    %v250 = vld [vmem:[#allocation2 + $0x5e8] sm:$0xff]
    %v251 = vld [vmem:[#allocation2 + $0x5f0] sm:$0xff]
    %v252 = vld [vmem:[#allocation2 + $0x5f8] sm:$0xff]
    %v253 = vld [vmem:[%s4] sm:$0x3f]
    %v255 = vperm.slane %v253, 0
    %v256 = vperm.slane %v253, 1
    %v257 = vperm.slane %v253, 2
    %v258 = vperm.slane %v253, 3
    %v259 = vperm.slane %v253, 4
    %v260 = vperm.slane %v253, 5
    %267 = vmatpush.msra.mxu0 %v151
    %268 = vmatpush.msra.mxu0 %v145
    %269 = vmatpush.msra.mxu0 %v139
    %270 = vmatpush.msra.mxu0 %v133
    %271 = vmatpush.msra.mxu0 %v127
    %272 = vmatpush.msra.mxu0 %v121
    %273 = vmatpush.msra.mxu0 %v115
    %274 = vmatpush.msra.mxu0 %v109
    %275 = vmatpush.msra.mxu0 %v103
    %276 = vmatpush.msra.mxu0 %v97
    %277 = vmatpush.msra.mxu0 %v91
    %278 = vmatpush.msra.mxu0 %v85
    %279 = vmatpush.msra.mxu0 %v79
    %280 = vmatpush.msra.mxu0 %v73
    %281 = vmatpush.msra.mxu0 %v67
    %282 = vmatpush.msra.mxu0 %v61
    %283 = vmatmul.f32.gmra.mxu0 %v57
    %v284 = vpop.f32.mrf.mxu0
    %v285 = vadd.f32 %v255, %v284
    %286 = vdwg.mxu0
    %287 = vmatpush.msra.mxu0 %v247
    %288 = vmatpush.msra.mxu0 %v241
    %289 = vmatpush.msra.mxu0 %v235
    %290 = vmatpush.msra.mxu0 %v229
    %291 = vmatpush.msra.mxu0 %v223
    %292 = vmatpush.msra.mxu0 %v217
    %293 = vmatpush.msra.mxu0 %v211
    %294 = vmatpush.msra.mxu0 %v205
    %295 = vmatpush.msra.mxu0 %v199
    %296 = vmatpush.msra.mxu0 %v193
    %297 = vmatpush.msra.mxu0 %v187
    %298 = vmatpush.msra.mxu0 %v181
    %299 = vmatpush.msra.mxu0 %v175
    %300 = vmatpush.msra.mxu0 %v169
    %301 = vmatpush.msra.mxu0 %v163
    %302 = vmatpush.msra.mxu0 %v157
    %303 = vmatmul.f32.gmra.mxu0 %v58
    %v304 = vpop.f32.mrf.mxu0
    %v305 = vadd.f32 %v285, %v304
    %306 = vdwg.mxu0
    %307 = vmatpush.msra.mxu0 %v152
    %308 = vmatpush.msra.mxu0 %v146
    %309 = vmatpush.msra.mxu0 %v140
    %310 = vmatpush.msra.mxu0 %v134
    %311 = vmatpush.msra.mxu0 %v128
    %312 = vmatpush.msra.mxu0 %v122
    %313 = vmatpush.msra.mxu0 %v116
    %314 = vmatpush.msra.mxu0 %v110
    %315 = vmatpush.msra.mxu0 %v104
    %316 = vmatpush.msra.mxu0 %v98
    %317 = vmatpush.msra.mxu0 %v92
    %318 = vmatpush.msra.mxu0 %v86
    %319 = vmatpush.msra.mxu0 %v80
    %320 = vmatpush.msra.mxu0 %v74
    %321 = vmatpush.msra.mxu0 %v68
    %322 = vmatpush.msra.mxu0 %v62
    %323 = vmatmul.f32.gmra.mxu0 %v57
    %v324 = vpop.f32.mrf.mxu0
    %v325 = vadd.f32 %v256, %v324
    %326 = vdwg.mxu0
    %327 = vmatpush.msra.mxu0 %v248
    %328 = vmatpush.msra.mxu0 %v242
    %329 = vmatpush.msra.mxu0 %v236
    %330 = vmatpush.msra.mxu0 %v230
    %331 = vmatpush.msra.mxu0 %v224
    %332 = vmatpush.msra.mxu0 %v218
    %333 = vmatpush.msra.mxu0 %v212
    %334 = vmatpush.msra.mxu0 %v206
    %335 = vmatpush.msra.mxu0 %v200
    %336 = vmatpush.msra.mxu0 %v194
    %337 = vmatpush.msra.mxu0 %v188
    %338 = vmatpush.msra.mxu0 %v182
    %339 = vmatpush.msra.mxu0 %v176
    %340 = vmatpush.msra.mxu0 %v170
    %341 = vmatpush.msra.mxu0 %v164
    %342 = vmatpush.msra.mxu0 %v158
    %343 = vmatmul.f32.gmra.mxu0 %v58
    %v344 = vpop.f32.mrf.mxu0
    %v345 = vadd.f32 %v325, %v344
    %346 = vdwg.mxu0
    %347 = vmatpush.msra.mxu0 %v153
    %348 = vmatpush.msra.mxu0 %v147
    %349 = vmatpush.msra.mxu0 %v141
    %350 = vmatpush.msra.mxu0 %v135
    %351 = vmatpush.msra.mxu0 %v129
    %352 = vmatpush.msra.mxu0 %v123
    %353 = vmatpush.msra.mxu0 %v117
    %354 = vmatpush.msra.mxu0 %v111
    %355 = vmatpush.msra.mxu0 %v105
    %356 = vmatpush.msra.mxu0 %v99
    %357 = vmatpush.msra.mxu0 %v93
    %358 = vmatpush.msra.mxu0 %v87
    %359 = vmatpush.msra.mxu0 %v81
    %360 = vmatpush.msra.mxu0 %v75
    %361 = vmatpush.msra.mxu0 %v69
    %362 = vmatpush.msra.mxu0 %v63
    %363 = vmatmul.f32.gmra.mxu0 %v57
    %v364 = vpop.f32.mrf.mxu0
    %v365 = vadd.f32 %v257, %v364
    %366 = vdwg.mxu0
    %367 = vmatpush.msra.mxu0 %v249
    %368 = vmatpush.msra.mxu0 %v243
    %369 = vmatpush.msra.mxu0 %v237
    %370 = vmatpush.msra.mxu0 %v231
    %371 = vmatpush.msra.mxu0 %v225
    %372 = vmatpush.msra.mxu0 %v219
    %373 = vmatpush.msra.mxu0 %v213
    %374 = vmatpush.msra.mxu0 %v207
    %375 = vmatpush.msra.mxu0 %v201
    %376 = vmatpush.msra.mxu0 %v195
    %377 = vmatpush.msra.mxu0 %v189
    %378 = vmatpush.msra.mxu0 %v183
    %379 = vmatpush.msra.mxu0 %v177
    %380 = vmatpush.msra.mxu0 %v171
    %381 = vmatpush.msra.mxu0 %v165
    %382 = vmatpush.msra.mxu0 %v159
    %383 = vmatmul.f32.gmra.mxu0 %v58
    %v384 = vpop.f32.mrf.mxu0
    %v385 = vadd.f32 %v365, %v384
    %386 = vdwg.mxu0
    %387 = vmatpush.msra.mxu0 %v154
    %388 = vmatpush.msra.mxu0 %v148
    %389 = vmatpush.msra.mxu0 %v142
    %390 = vmatpush.msra.mxu0 %v136
    %391 = vmatpush.msra.mxu0 %v130
    %392 = vmatpush.msra.mxu0 %v124
    %393 = vmatpush.msra.mxu0 %v118
    %394 = vmatpush.msra.mxu0 %v112
    %395 = vmatpush.msra.mxu0 %v106
    %396 = vmatpush.msra.mxu0 %v100
    %397 = vmatpush.msra.mxu0 %v94
    %398 = vmatpush.msra.mxu0 %v88
    %399 = vmatpush.msra.mxu0 %v82
    %400 = vmatpush.msra.mxu0 %v76
    %401 = vmatpush.msra.mxu0 %v70
    %402 = vmatpush.msra.mxu0 %v64
    %403 = vmatmul.f32.gmra.mxu0 %v57
    %v404 = vpop.f32.mrf.mxu0
    %v405 = vadd.f32 %v258, %v404
    %406 = vdwg.mxu0
    %407 = vmatpush.msra.mxu0 %v250
    %408 = vmatpush.msra.mxu0 %v244
    %409 = vmatpush.msra.mxu0 %v238
    %410 = vmatpush.msra.mxu0 %v232
    %411 = vmatpush.msra.mxu0 %v226
    %412 = vmatpush.msra.mxu0 %v220
    %413 = vmatpush.msra.mxu0 %v214
    %414 = vmatpush.msra.mxu0 %v208
    %415 = vmatpush.msra.mxu0 %v202
    %416 = vmatpush.msra.mxu0 %v196
    %417 = vmatpush.msra.mxu0 %v190
    %418 = vmatpush.msra.mxu0 %v184
    %419 = vmatpush.msra.mxu0 %v178
    %420 = vmatpush.msra.mxu0 %v172
    %421 = vmatpush.msra.mxu0 %v166
    %422 = vmatpush.msra.mxu0 %v160
    %423 = vmatmul.f32.gmra.mxu0 %v58
    %v424 = vpop.f32.mrf.mxu0
    %v425 = vadd.f32 %v405, %v424
    %426 = vdwg.mxu0
    %427 = vmatpush.msra.mxu0 %v155
    %428 = vmatpush.msra.mxu0 %v149
    %429 = vmatpush.msra.mxu0 %v143
    %430 = vmatpush.msra.mxu0 %v137
    %431 = vmatpush.msra.mxu0 %v131
    %432 = vmatpush.msra.mxu0 %v125
    %433 = vmatpush.msra.mxu0 %v119
    %434 = vmatpush.msra.mxu0 %v113
    %435 = vmatpush.msra.mxu0 %v107
    %436 = vmatpush.msra.mxu0 %v101
    %437 = vmatpush.msra.mxu0 %v95
    %438 = vmatpush.msra.mxu0 %v89
    %439 = vmatpush.msra.mxu0 %v83
    %440 = vmatpush.msra.mxu0 %v77
    %441 = vmatpush.msra.mxu0 %v71
    %442 = vmatpush.msra.mxu0 %v65
    %443 = vmatmul.f32.gmra.mxu0 %v57
    %v444 = vpop.f32.mrf.mxu0
    %v445 = vadd.f32 %v259, %v444
    %446 = vdwg.mxu0
    %447 = vmatpush.msra.mxu0 %v251
    %448 = vmatpush.msra.mxu0 %v245
    %449 = vmatpush.msra.mxu0 %v239
    %450 = vmatpush.msra.mxu0 %v233
    %451 = vmatpush.msra.mxu0 %v227
    %452 = vmatpush.msra.mxu0 %v221
    %453 = vmatpush.msra.mxu0 %v215
    %454 = vmatpush.msra.mxu0 %v209
    %455 = vmatpush.msra.mxu0 %v203
    %456 = vmatpush.msra.mxu0 %v197
    %457 = vmatpush.msra.mxu0 %v191
    %458 = vmatpush.msra.mxu0 %v185
    %459 = vmatpush.msra.mxu0 %v179
    %460 = vmatpush.msra.mxu0 %v173
    %461 = vmatpush.msra.mxu0 %v167
    %462 = vmatpush.msra.mxu0 %v161
    %463 = vmatmul.f32.gmra.mxu0 %v58
    %v464 = vpop.f32.mrf.mxu0
    %v465 = vadd.f32 %v445, %v464
    %466 = vdwg.mxu0
    %467 = vmatpush.msra.mxu0 %v156
    %468 = vmatpush.msra.mxu0 %v150
    %469 = vmatpush.msra.mxu0 %v144
    %470 = vmatpush.msra.mxu0 %v138
    %471 = vmatpush.msra.mxu0 %v132
    %472 = vmatpush.msra.mxu0 %v126
    %473 = vmatpush.msra.mxu0 %v120
    %474 = vmatpush.msra.mxu0 %v114
    %475 = vmatpush.msra.mxu0 %v108
    %476 = vmatpush.msra.mxu0 %v102
    %477 = vmatpush.msra.mxu0 %v96
    %478 = vmatpush.msra.mxu0 %v90
    %479 = vmatpush.msra.mxu0 %v84
    %480 = vmatpush.msra.mxu0 %v78
    %481 = vmatpush.msra.mxu0 %v72
    %482 = vmatpush.msra.mxu0 %v66
    %483 = vmatmul.f32.gmra.mxu0 %v57
    %v484 = vpop.f32.mrf.mxu0
    %v485 = vadd.f32 %v260, %v484
    %486 = vdwg.mxu0
    %487 = vmatpush.msra.mxu0 %v252
    %488 = vmatpush.msra.mxu0 %v246
    %489 = vmatpush.msra.mxu0 %v240
    %490 = vmatpush.msra.mxu0 %v234
    %491 = vmatpush.msra.mxu0 %v228
    %492 = vmatpush.msra.mxu0 %v222
    %493 = vmatpush.msra.mxu0 %v216
    %494 = vmatpush.msra.mxu0 %v210
    %495 = vmatpush.msra.mxu0 %v204
    %496 = vmatpush.msra.mxu0 %v198
    %497 = vmatpush.msra.mxu0 %v192
    %498 = vmatpush.msra.mxu0 %v186
    %499 = vmatpush.msra.mxu0 %v180
    %500 = vmatpush.msra.mxu0 %v174
    %501 = vmatpush.msra.mxu0 %v168
    %502 = vmatpush.msra.mxu0 %v162
    %503 = vmatmul.f32.gmra.mxu0 %v58
    %v504 = vpop.f32.mrf.mxu0
    %v505 = vadd.f32 %v485, %v504
    %506 = vdwg.mxu0
    %v507 = vld [vmem:[#allocation4] sm:$0xff]
    %v508 = vld [vmem:[#allocation4 + $0x8] sm:$0xff]
    %v509 = vld [vmem:[#allocation4 + $0x10] sm:$0xff]
    %v510 = vld [vmem:[#allocation4 + $0x18] sm:$0xff]
    %v511 = vld [vmem:[#allocation4 + $0x20] sm:$0xff]
    %v512 = vld [vmem:[#allocation4 + $0x28] sm:$0xff]
    %v513 = vld [vmem:[#allocation4 + $0x30] sm:$0xff]
    %v514 = vld [vmem:[#allocation4 + $0x38] sm:$0xff]
    %v515 = vld [vmem:[#allocation4 + $0x40] sm:$0xff]
    %v516 = vld [vmem:[#allocation4 + $0x48] sm:$0xff]
    %v517 = vld [vmem:[#allocation4 + $0x50] sm:$0xff]
    %v518 = vld [vmem:[#allocation4 + $0x58] sm:$0xff]
    %v519 = vld [vmem:[#allocation4 + $0x60] sm:$0xff]
    %v520 = vld [vmem:[#allocation4 + $0x68] sm:$0xff]
    %v521 = vld [vmem:[#allocation4 + $0x70] sm:$0xff]
    %v522 = vld [vmem:[#allocation4 + $0x78] sm:$0xff]
    %v523 = vld [vmem:[#allocation4 + $0x80] sm:$0xff]
    %v524 = vld [vmem:[#allocation4 + $0x88] sm:$0xff]
    %v525 = vld [vmem:[#allocation4 + $0x90] sm:$0xff]
    %v526 = vld [vmem:[#allocation4 + $0x98] sm:$0xff]
    %v527 = vld [vmem:[#allocation4 + $0xa0] sm:$0xff]
    %v528 = vld [vmem:[#allocation4 + $0xa8] sm:$0xff]
    %v529 = vld [vmem:[#allocation4 + $0xb0] sm:$0xff]
    %v530 = vld [vmem:[#allocation4 + $0xb8] sm:$0xff]
    %v531 = vld [vmem:[#allocation4 + $0xc0] sm:$0xff]
    %v532 = vld [vmem:[#allocation4 + $0xc8] sm:$0xff]
    %v533 = vld [vmem:[#allocation4 + $0xd0] sm:$0xff]
    %v534 = vld [vmem:[#allocation4 + $0xd8] sm:$0xff]
    %v535 = vld [vmem:[#allocation4 + $0xe0] sm:$0xff]
    %v536 = vld [vmem:[#allocation4 + $0xe8] sm:$0xff]
    %v537 = vld [vmem:[#allocation4 + $0xf0] sm:$0xff]
    %v538 = vld [vmem:[#allocation4 + $0xf8] sm:$0xff]
    %v539 = vld [vmem:[#allocation4 + $0x100] sm:$0xff]
    %v540 = vld [vmem:[#allocation4 + $0x108] sm:$0xff]
    %v541 = vld [vmem:[#allocation4 + $0x110] sm:$0xff]
    %v542 = vld [vmem:[#allocation4 + $0x118] sm:$0xff]
    %v543 = vld [vmem:[#allocation4 + $0x120] sm:$0xff]
    %v544 = vld [vmem:[#allocation4 + $0x128] sm:$0xff]
    %v545 = vld [vmem:[#allocation4 + $0x130] sm:$0xff]
    %v546 = vld [vmem:[#allocation4 + $0x138] sm:$0xff]
    %v547 = vld [vmem:[#allocation4 + $0x140] sm:$0xff]
    %v548 = vld [vmem:[#allocation4 + $0x148] sm:$0xff]
    %v549 = vld [vmem:[#allocation4 + $0x150] sm:$0xff]
    %v550 = vld [vmem:[#allocation4 + $0x158] sm:$0xff]
    %v551 = vld [vmem:[#allocation4 + $0x160] sm:$0xff]
    %v552 = vld [vmem:[#allocation4 + $0x168] sm:$0xff]
    %v553 = vld [vmem:[#allocation4 + $0x170] sm:$0xff]
    %v554 = vld [vmem:[#allocation4 + $0x178] sm:$0xff]
    %v555 = vld [vmem:[#allocation4 + $0x180] sm:$0xff]
    %v556 = vld [vmem:[#allocation4 + $0x188] sm:$0xff]
    %v557 = vld [vmem:[#allocation4 + $0x190] sm:$0xff]
    %v558 = vld [vmem:[#allocation4 + $0x198] sm:$0xff]
    %v559 = vld [vmem:[#allocation4 + $0x1a0] sm:$0xff]
    %v560 = vld [vmem:[#allocation4 + $0x1a8] sm:$0xff]
    %v561 = vld [vmem:[#allocation4 + $0x1b0] sm:$0xff]
    %v562 = vld [vmem:[#allocation4 + $0x1b8] sm:$0xff]
    %v563 = vld [vmem:[#allocation4 + $0x1c0] sm:$0xff]
    %v564 = vld [vmem:[#allocation4 + $0x1c8] sm:$0xff]
    %v565 = vld [vmem:[#allocation4 + $0x1d0] sm:$0xff]
    %v566 = vld [vmem:[#allocation4 + $0x1d8] sm:$0xff]
    %v567 = vld [vmem:[#allocation4 + $0x1e0] sm:$0xff]
    %v568 = vld [vmem:[#allocation4 + $0x1e8] sm:$0xff]
    %v569 = vld [vmem:[#allocation4 + $0x1f0] sm:$0xff]
    %v570 = vld [vmem:[#allocation4 + $0x1f8] sm:$0xff]
    %v571 = vld [vmem:[#allocation4 + $0x200] sm:$0xff]
    %v572 = vld [vmem:[#allocation4 + $0x208] sm:$0xff]
    %v573 = vld [vmem:[#allocation4 + $0x210] sm:$0xff]
    %v574 = vld [vmem:[#allocation4 + $0x218] sm:$0xff]
    %v575 = vld [vmem:[#allocation4 + $0x220] sm:$0xff]
    %v576 = vld [vmem:[#allocation4 + $0x228] sm:$0xff]
    %v577 = vld [vmem:[#allocation4 + $0x230] sm:$0xff]
    %v578 = vld [vmem:[#allocation4 + $0x238] sm:$0xff]
    %v579 = vld [vmem:[#allocation4 + $0x240] sm:$0xff]
    %v580 = vld [vmem:[#allocation4 + $0x248] sm:$0xff]
    %v581 = vld [vmem:[#allocation4 + $0x250] sm:$0xff]
    %v582 = vld [vmem:[#allocation4 + $0x258] sm:$0xff]
    %v583 = vld [vmem:[#allocation4 + $0x260] sm:$0xff]
    %v584 = vld [vmem:[#allocation4 + $0x268] sm:$0xff]
    %v585 = vld [vmem:[#allocation4 + $0x270] sm:$0xff]
    %v586 = vld [vmem:[#allocation4 + $0x278] sm:$0xff]
    %v587 = vld [vmem:[#allocation4 + $0x280] sm:$0xff]
    %v588 = vld [vmem:[#allocation4 + $0x288] sm:$0xff]
    %v589 = vld [vmem:[#allocation4 + $0x290] sm:$0xff]
    %v590 = vld [vmem:[#allocation4 + $0x298] sm:$0xff]
    %v591 = vld [vmem:[#allocation4 + $0x2a0] sm:$0xff]
    %v592 = vld [vmem:[#allocation4 + $0x2a8] sm:$0xff]
    %v593 = vld [vmem:[#allocation4 + $0x2b0] sm:$0xff]
    %v594 = vld [vmem:[#allocation4 + $0x2b8] sm:$0xff]
    %v595 = vld [vmem:[#allocation4 + $0x2c0] sm:$0xff]
    %v596 = vld [vmem:[#allocation4 + $0x2c8] sm:$0xff]
    %v597 = vld [vmem:[#allocation4 + $0x2d0] sm:$0xff]
    %v598 = vld [vmem:[#allocation4 + $0x2d8] sm:$0xff]
    %v599 = vld [vmem:[#allocation4 + $0x2e0] sm:$0xff]
    %v600 = vld [vmem:[#allocation4 + $0x2e8] sm:$0xff]
    %v601 = vld [vmem:[#allocation4 + $0x2f0] sm:$0xff]
    %v602 = vld [vmem:[#allocation4 + $0x2f8] sm:$0xff]
    %v603 = vld [vmem:[#allocation4 + $0x300] sm:$0xff]
    %v604 = vld [vmem:[#allocation4 + $0x308] sm:$0xff]
    %v605 = vld [vmem:[#allocation4 + $0x310] sm:$0xff]
    %v606 = vld [vmem:[#allocation4 + $0x318] sm:$0xff]
    %v607 = vld [vmem:[#allocation4 + $0x320] sm:$0xff]
    %v608 = vld [vmem:[#allocation4 + $0x328] sm:$0xff]
    %v609 = vld [vmem:[#allocation4 + $0x330] sm:$0xff]
    %v610 = vld [vmem:[#allocation4 + $0x338] sm:$0xff]
    %v611 = vld [vmem:[#allocation4 + $0x340] sm:$0xff]
    %v612 = vld [vmem:[#allocation4 + $0x348] sm:$0xff]
    %v613 = vld [vmem:[#allocation4 + $0x350] sm:$0xff]
    %v614 = vld [vmem:[#allocation4 + $0x358] sm:$0xff]
    %v615 = vld [vmem:[#allocation4 + $0x360] sm:$0xff]
    %v616 = vld [vmem:[#allocation4 + $0x368] sm:$0xff]
    %v617 = vld [vmem:[#allocation4 + $0x370] sm:$0xff]
    %v618 = vld [vmem:[#allocation4 + $0x378] sm:$0xff]
    %v619 = vld [vmem:[#allocation4 + $0x380] sm:$0xff]
    %v620 = vld [vmem:[#allocation4 + $0x388] sm:$0xff]
    %v621 = vld [vmem:[#allocation4 + $0x390] sm:$0xff]
    %v622 = vld [vmem:[#allocation4 + $0x398] sm:$0xff]
    %v623 = vld [vmem:[#allocation4 + $0x3a0] sm:$0xff]
    %v624 = vld [vmem:[#allocation4 + $0x3a8] sm:$0xff]
    %v625 = vld [vmem:[#allocation4 + $0x3b0] sm:$0xff]
    %v626 = vld [vmem:[#allocation4 + $0x3b8] sm:$0xff]
    %v627 = vld [vmem:[#allocation4 + $0x3c0] sm:$0xff]
    %v628 = vld [vmem:[#allocation4 + $0x3c8] sm:$0xff]
    %v629 = vld [vmem:[#allocation4 + $0x3d0] sm:$0xff]
    %v630 = vld [vmem:[#allocation4 + $0x3d8] sm:$0xff]
    %v631 = vld [vmem:[#allocation4 + $0x3e0] sm:$0xff]
    %v632 = vld [vmem:[#allocation4 + $0x3e8] sm:$0xff]
    %v633 = vld [vmem:[#allocation4 + $0x3f0] sm:$0xff]
    %v634 = vld [vmem:[#allocation4 + $0x3f8] sm:$0xff]
    %v635 = vld [vmem:[#allocation4 + $0x400] sm:$0xff]
    %v636 = vld [vmem:[#allocation4 + $0x408] sm:$0xff]
    %v637 = vld [vmem:[#allocation4 + $0x410] sm:$0xff]
    %v638 = vld [vmem:[#allocation4 + $0x418] sm:$0xff]
    %v639 = vld [vmem:[#allocation4 + $0x420] sm:$0xff]
    %v640 = vld [vmem:[#allocation4 + $0x428] sm:$0xff]
    %v641 = vld [vmem:[#allocation4 + $0x430] sm:$0xff]
    %v642 = vld [vmem:[#allocation4 + $0x438] sm:$0xff]
    %v643 = vld [vmem:[#allocation4 + $0x440] sm:$0xff]
    %v644 = vld [vmem:[#allocation4 + $0x448] sm:$0xff]
    %v645 = vld [vmem:[#allocation4 + $0x450] sm:$0xff]
    %v646 = vld [vmem:[#allocation4 + $0x458] sm:$0xff]
    %v647 = vld [vmem:[#allocation4 + $0x460] sm:$0xff]
    %v648 = vld [vmem:[#allocation4 + $0x468] sm:$0xff]
    %v649 = vld [vmem:[#allocation4 + $0x470] sm:$0xff]
    %v650 = vld [vmem:[#allocation4 + $0x478] sm:$0xff]
    %v651 = vld [vmem:[#allocation4 + $0x480] sm:$0xff]
    %v652 = vld [vmem:[#allocation4 + $0x488] sm:$0xff]
    %v653 = vld [vmem:[#allocation4 + $0x490] sm:$0xff]
    %v654 = vld [vmem:[#allocation4 + $0x498] sm:$0xff]
    %v655 = vld [vmem:[#allocation4 + $0x4a0] sm:$0xff]
    %v656 = vld [vmem:[#allocation4 + $0x4a8] sm:$0xff]
    %v657 = vld [vmem:[#allocation4 + $0x4b0] sm:$0xff]
    %v658 = vld [vmem:[#allocation4 + $0x4b8] sm:$0xff]
    %v659 = vld [vmem:[#allocation4 + $0x4c0] sm:$0xff]
    %v660 = vld [vmem:[#allocation4 + $0x4c8] sm:$0xff]
    %v661 = vld [vmem:[#allocation4 + $0x4d0] sm:$0xff]
    %v662 = vld [vmem:[#allocation4 + $0x4d8] sm:$0xff]
    %v663 = vld [vmem:[#allocation4 + $0x4e0] sm:$0xff]
    %v664 = vld [vmem:[#allocation4 + $0x4e8] sm:$0xff]
    %v665 = vld [vmem:[#allocation4 + $0x4f0] sm:$0xff]
    %v666 = vld [vmem:[#allocation4 + $0x4f8] sm:$0xff]
    %v667 = vld [vmem:[#allocation4 + $0x500] sm:$0xff]
    %v668 = vld [vmem:[#allocation4 + $0x508] sm:$0xff]
    %v669 = vld [vmem:[#allocation4 + $0x510] sm:$0xff]
    %v670 = vld [vmem:[#allocation4 + $0x518] sm:$0xff]
    %v671 = vld [vmem:[#allocation4 + $0x520] sm:$0xff]
    %v672 = vld [vmem:[#allocation4 + $0x528] sm:$0xff]
    %v673 = vld [vmem:[#allocation4 + $0x530] sm:$0xff]
    %v674 = vld [vmem:[#allocation4 + $0x538] sm:$0xff]
    %v675 = vld [vmem:[#allocation4 + $0x540] sm:$0xff]
    %v676 = vld [vmem:[#allocation4 + $0x548] sm:$0xff]
    %v677 = vld [vmem:[#allocation4 + $0x550] sm:$0xff]
    %v678 = vld [vmem:[#allocation4 + $0x558] sm:$0xff]
    %v679 = vld [vmem:[#allocation4 + $0x560] sm:$0xff]
    %v680 = vld [vmem:[#allocation4 + $0x568] sm:$0xff]
    %v681 = vld [vmem:[#allocation4 + $0x570] sm:$0xff]
    %v682 = vld [vmem:[#allocation4 + $0x578] sm:$0xff]
    %v683 = vld [vmem:[#allocation4 + $0x580] sm:$0xff]
    %v684 = vld [vmem:[#allocation4 + $0x588] sm:$0xff]
    %v685 = vld [vmem:[#allocation4 + $0x590] sm:$0xff]
    %v686 = vld [vmem:[#allocation4 + $0x598] sm:$0xff]
    %v687 = vld [vmem:[#allocation4 + $0x5a0] sm:$0xff]
    %v688 = vld [vmem:[#allocation4 + $0x5a8] sm:$0xff]
    %v689 = vld [vmem:[#allocation4 + $0x5b0] sm:$0xff]
    %v690 = vld [vmem:[#allocation4 + $0x5b8] sm:$0xff]
    %v691 = vld [vmem:[#allocation4 + $0x5c0] sm:$0xff]
    %v692 = vld [vmem:[#allocation4 + $0x5c8] sm:$0xff]
    %v693 = vld [vmem:[#allocation4 + $0x5d0] sm:$0xff]
    %v694 = vld [vmem:[#allocation4 + $0x5d8] sm:$0xff]
    %v695 = vld [vmem:[#allocation4 + $0x5e0] sm:$0xff]
    %v696 = vld [vmem:[#allocation4 + $0x5e8] sm:$0xff]
    %v697 = vld [vmem:[#allocation4 + $0x5f0] sm:$0xff]
    %v698 = vld [vmem:[#allocation4 + $0x5f8] sm:$0xff]
    %699 = vmatpush.msra.mxu0 %v597
    %700 = vmatpush.msra.mxu0 %v591
    %701 = vmatpush.msra.mxu0 %v585
    %702 = vmatpush.msra.mxu0 %v579
    %703 = vmatpush.msra.mxu0 %v573
    %704 = vmatpush.msra.mxu0 %v567
    %705 = vmatpush.msra.mxu0 %v561
    %706 = vmatpush.msra.mxu0 %v555
    %707 = vmatpush.msra.mxu0 %v549
    %708 = vmatpush.msra.mxu0 %v543
    %709 = vmatpush.msra.mxu0 %v537
    %710 = vmatpush.msra.mxu0 %v531
    %711 = vmatpush.msra.mxu0 %v525
    %712 = vmatpush.msra.mxu0 %v519
    %713 = vmatpush.msra.mxu0 %v513
    %714 = vmatpush.msra.mxu0 %v507
    %715 = vmatmul.f32.gmra.mxu0 %v59
    %v716 = vpop.f32.mrf.mxu0
    %v717 = vadd.f32 0.0, %v716
    %718 = vdwg.mxu0
    %719 = vmatpush.msra.mxu0 %v693
    %720 = vmatpush.msra.mxu0 %v687
    %721 = vmatpush.msra.mxu0 %v681
    %722 = vmatpush.msra.mxu0 %v675
    %723 = vmatpush.msra.mxu0 %v669
    %724 = vmatpush.msra.mxu0 %v663
    %725 = vmatpush.msra.mxu0 %v657
    %726 = vmatpush.msra.mxu0 %v651
    %727 = vmatpush.msra.mxu0 %v645
    %728 = vmatpush.msra.mxu0 %v639
    %729 = vmatpush.msra.mxu0 %v633
    %730 = vmatpush.msra.mxu0 %v627
    %731 = vmatpush.msra.mxu0 %v621
    %732 = vmatpush.msra.mxu0 %v615
    %733 = vmatpush.msra.mxu0 %v609
    %734 = vmatpush.msra.mxu0 %v603
    %735 = vmatmul.f32.gmra.mxu0 %v60
    %v736 = vpop.f32.mrf.mxu0
    %v737 = vadd.f32 %v717, %v736
    %738 = vdwg.mxu0
    %739 = vmatpush.msra.mxu0 %v598
    %740 = vmatpush.msra.mxu0 %v592
    %741 = vmatpush.msra.mxu0 %v586
    %742 = vmatpush.msra.mxu0 %v580
    %743 = vmatpush.msra.mxu0 %v574
    %744 = vmatpush.msra.mxu0 %v568
    %745 = vmatpush.msra.mxu0 %v562
    %746 = vmatpush.msra.mxu0 %v556
    %747 = vmatpush.msra.mxu0 %v550
    %748 = vmatpush.msra.mxu0 %v544
    %749 = vmatpush.msra.mxu0 %v538
    %750 = vmatpush.msra.mxu0 %v532
    %751 = vmatpush.msra.mxu0 %v526
    %752 = vmatpush.msra.mxu0 %v520
    %753 = vmatpush.msra.mxu0 %v514
    %754 = vmatpush.msra.mxu0 %v508
    %755 = vmatmul.f32.gmra.mxu0 %v59
    %v756 = vpop.f32.mrf.mxu0
    %v757 = vadd.f32 0.0, %v756
    %758 = vdwg.mxu0
    %759 = vmatpush.msra.mxu0 %v694
    %760 = vmatpush.msra.mxu0 %v688
    %761 = vmatpush.msra.mxu0 %v682
    %762 = vmatpush.msra.mxu0 %v676
    %763 = vmatpush.msra.mxu0 %v670
    %764 = vmatpush.msra.mxu0 %v664
    %765 = vmatpush.msra.mxu0 %v658
    %766 = vmatpush.msra.mxu0 %v652
    %767 = vmatpush.msra.mxu0 %v646
    %768 = vmatpush.msra.mxu0 %v640
    %769 = vmatpush.msra.mxu0 %v634
    %770 = vmatpush.msra.mxu0 %v628
    %771 = vmatpush.msra.mxu0 %v622
    %772 = vmatpush.msra.mxu0 %v616
    %773 = vmatpush.msra.mxu0 %v610
    %774 = vmatpush.msra.mxu0 %v604
    %775 = vmatmul.f32.gmra.mxu0 %v60
    %v776 = vpop.f32.mrf.mxu0
    %v777 = vadd.f32 %v757, %v776
    %778 = vdwg.mxu0
    %779 = vmatpush.msra.mxu0 %v599
    %780 = vmatpush.msra.mxu0 %v593
    %781 = vmatpush.msra.mxu0 %v587
    %782 = vmatpush.msra.mxu0 %v581
    %783 = vmatpush.msra.mxu0 %v575
    %784 = vmatpush.msra.mxu0 %v569
    %785 = vmatpush.msra.mxu0 %v563
    %786 = vmatpush.msra.mxu0 %v557
    %787 = vmatpush.msra.mxu0 %v551
    %788 = vmatpush.msra.mxu0 %v545
    %789 = vmatpush.msra.mxu0 %v539
    %790 = vmatpush.msra.mxu0 %v533
    %791 = vmatpush.msra.mxu0 %v527
    %792 = vmatpush.msra.mxu0 %v521
    %793 = vmatpush.msra.mxu0 %v515
    %794 = vmatpush.msra.mxu0 %v509
    %795 = vmatmul.f32.gmra.mxu0 %v59
    %v796 = vpop.f32.mrf.mxu0
    %v797 = vadd.f32 0.0, %v796
    %798 = vdwg.mxu0
    %799 = vmatpush.msra.mxu0 %v695
    %800 = vmatpush.msra.mxu0 %v689
    %801 = vmatpush.msra.mxu0 %v683
    %802 = vmatpush.msra.mxu0 %v677
    %803 = vmatpush.msra.mxu0 %v671
    %804 = vmatpush.msra.mxu0 %v665
    %805 = vmatpush.msra.mxu0 %v659
    %806 = vmatpush.msra.mxu0 %v653
    %807 = vmatpush.msra.mxu0 %v647
    %808 = vmatpush.msra.mxu0 %v641
    %809 = vmatpush.msra.mxu0 %v635
    %810 = vmatpush.msra.mxu0 %v629
    %811 = vmatpush.msra.mxu0 %v623
    %812 = vmatpush.msra.mxu0 %v617
    %813 = vmatpush.msra.mxu0 %v611
    %814 = vmatpush.msra.mxu0 %v605
    %815 = vmatmul.f32.gmra.mxu0 %v60
    %v816 = vpop.f32.mrf.mxu0
    %v817 = vadd.f32 %v797, %v816
    %818 = vdwg.mxu0
    %819 = vmatpush.msra.mxu0 %v600
    %820 = vmatpush.msra.mxu0 %v594
    %821 = vmatpush.msra.mxu0 %v588
    %822 = vmatpush.msra.mxu0 %v582
    %823 = vmatpush.msra.mxu0 %v576
    %824 = vmatpush.msra.mxu0 %v570
    %825 = vmatpush.msra.mxu0 %v564
    %826 = vmatpush.msra.mxu0 %v558
    %827 = vmatpush.msra.mxu0 %v552
    %828 = vmatpush.msra.mxu0 %v546
    %829 = vmatpush.msra.mxu0 %v540
    %830 = vmatpush.msra.mxu0 %v534
    %831 = vmatpush.msra.mxu0 %v528
    %832 = vmatpush.msra.mxu0 %v522
    %833 = vmatpush.msra.mxu0 %v516
    %834 = vmatpush.msra.mxu0 %v510
    %835 = vmatmul.f32.gmra.mxu0 %v59
    %v836 = vpop.f32.mrf.mxu0
    %v837 = vadd.f32 0.0, %v836
    %838 = vdwg.mxu0
    %839 = vmatpush.msra.mxu0 %v696
    %840 = vmatpush.msra.mxu0 %v690
    %841 = vmatpush.msra.mxu0 %v684
    %842 = vmatpush.msra.mxu0 %v678
    %843 = vmatpush.msra.mxu0 %v672
    %844 = vmatpush.msra.mxu0 %v666
    %845 = vmatpush.msra.mxu0 %v660
    %846 = vmatpush.msra.mxu0 %v654
    %847 = vmatpush.msra.mxu0 %v648
    %848 = vmatpush.msra.mxu0 %v642
    %849 = vmatpush.msra.mxu0 %v636
    %850 = vmatpush.msra.mxu0 %v630
    %851 = vmatpush.msra.mxu0 %v624
    %852 = vmatpush.msra.mxu0 %v618
    %853 = vmatpush.msra.mxu0 %v612
    %854 = vmatpush.msra.mxu0 %v606
    %855 = vmatmul.f32.gmra.mxu0 %v60
    %v856 = vpop.f32.mrf.mxu0
    %v857 = vadd.f32 %v837, %v856
    %858 = vdwg.mxu0
    %859 = vmatpush.msra.mxu0 %v601
    %860 = vmatpush.msra.mxu0 %v595
    %861 = vmatpush.msra.mxu0 %v589
    %862 = vmatpush.msra.mxu0 %v583
    %863 = vmatpush.msra.mxu0 %v577
    %864 = vmatpush.msra.mxu0 %v571
    %865 = vmatpush.msra.mxu0 %v565
    %866 = vmatpush.msra.mxu0 %v559
    %867 = vmatpush.msra.mxu0 %v553
    %868 = vmatpush.msra.mxu0 %v547
    %869 = vmatpush.msra.mxu0 %v541
    %870 = vmatpush.msra.mxu0 %v535
    %871 = vmatpush.msra.mxu0 %v529
    %872 = vmatpush.msra.mxu0 %v523
    %873 = vmatpush.msra.mxu0 %v517
    %874 = vmatpush.msra.mxu0 %v511
    %875 = vmatmul.f32.gmra.mxu0 %v59
    %v876 = vpop.f32.mrf.mxu0
    %v877 = vadd.f32 0.0, %v876
    %878 = vdwg.mxu0
    %879 = vmatpush.msra.mxu0 %v697
    %880 = vmatpush.msra.mxu0 %v691
    %881 = vmatpush.msra.mxu0 %v685
    %882 = vmatpush.msra.mxu0 %v679
    %883 = vmatpush.msra.mxu0 %v673
    %884 = vmatpush.msra.mxu0 %v667
    %885 = vmatpush.msra.mxu0 %v661
    %886 = vmatpush.msra.mxu0 %v655
    %887 = vmatpush.msra.mxu0 %v649
    %888 = vmatpush.msra.mxu0 %v643
    %889 = vmatpush.msra.mxu0 %v637
    %890 = vmatpush.msra.mxu0 %v631
    %891 = vmatpush.msra.mxu0 %v625
    %892 = vmatpush.msra.mxu0 %v619
    %893 = vmatpush.msra.mxu0 %v613
    %894 = vmatpush.msra.mxu0 %v607
    %895 = vmatmul.f32.gmra.mxu0 %v60
    %v896 = vpop.f32.mrf.mxu0
    %v897 = vadd.f32 %v877, %v896
    %898 = vdwg.mxu0
    %899 = vmatpush.msra.mxu0 %v602
    %900 = vmatpush.msra.mxu0 %v596
    %901 = vmatpush.msra.mxu0 %v590
    %902 = vmatpush.msra.mxu0 %v584
    %903 = vmatpush.msra.mxu0 %v578
    %904 = vmatpush.msra.mxu0 %v572
    %905 = vmatpush.msra.mxu0 %v566
    %906 = vmatpush.msra.mxu0 %v560
    %907 = vmatpush.msra.mxu0 %v554
    %908 = vmatpush.msra.mxu0 %v548
    %909 = vmatpush.msra.mxu0 %v542
    %910 = vmatpush.msra.mxu0 %v536
    %911 = vmatpush.msra.mxu0 %v530
    %912 = vmatpush.msra.mxu0 %v524
    %913 = vmatpush.msra.mxu0 %v518
    %914 = vmatpush.msra.mxu0 %v512
    %915 = vmatmul.f32.gmra.mxu0 %v59
    %v916 = vpop.f32.mrf.mxu0
    %v917 = vadd.f32 0.0, %v916
    %918 = vdwg.mxu0
    %919 = vmatpush.msra.mxu0 %v698
    %920 = vmatpush.msra.mxu0 %v692
    %921 = vmatpush.msra.mxu0 %v686
    %922 = vmatpush.msra.mxu0 %v680
    %923 = vmatpush.msra.mxu0 %v674
    %924 = vmatpush.msra.mxu0 %v668
    %925 = vmatpush.msra.mxu0 %v662
    %926 = vmatpush.msra.mxu0 %v656
    %927 = vmatpush.msra.mxu0 %v650
    %928 = vmatpush.msra.mxu0 %v644
    %929 = vmatpush.msra.mxu0 %v638
    %930 = vmatpush.msra.mxu0 %v632
    %931 = vmatpush.msra.mxu0 %v626
    %932 = vmatpush.msra.mxu0 %v620
    %933 = vmatpush.msra.mxu0 %v614
    %934 = vmatpush.msra.mxu0 %v608
    %935 = vmatmul.f32.gmra.mxu0 %v60
    %v936 = vpop.f32.mrf.mxu0
    %v937 = vadd.f32 %v917, %v936
    %938 = vdwg.mxu0
    %v939 = vadd.f32 %v305, %v737
    %v940 = vadd.f32 %v345, %v777
    %v941 = vxor.u32 %v939, 2147483648
    %v942 = vxor.u32 %v940, 2147483648
    %v943 = vmul.f32 %v941, 1.442695
    %v944 = vpow.pop %v943
    %v945 = vmul.f32 %v942, 1.442695
    %v946 = vpow.pop %v945
    %v947 = vadd.f32 %v944, 1.0
    %v948 = vadd.f32 %v946, 1.0
    %v949 = vrcp.pop %v947
    %v950 = vmul.f32 %v947, %v949
    %v951 = vsub.f32 1.0, %v950
    %v952 = vmul.f32 %v949, %v951
    %v953 = vadd.f32 %v949, %v952
    %vm954 = vweird.f32 %v947
    %vm955 = vweird.f32 %v949
    %vm956 = vmor %vm954, %vm955
    %v957 = vsel %vm956, %v949, %v953
    %v958 = vand.u32 2147483647, %v947
    %vm959 = vcmp.eq.f32.partialorder %v958, 8.507059e+37
    %v960 = vand.u32 %v947, 2147483648
    %v961 = vor.u32 1.1754944e-38, %v960
    %v962 = vsel %vm959, %v961, %v957
    %v963 = vmul.f32 1.0, %v962
    %v964 = vrcp.pop %v948
    %v965 = vmul.f32 %v948, %v964
    %v966 = vsub.f32 1.0, %v965
    %v967 = vmul.f32 %v964, %v966
    %v968 = vadd.f32 %v964, %v967
    %vm969 = vweird.f32 %v948
    %vm970 = vweird.f32 %v964
    %vm971 = vmor %vm969, %vm970
    %v972 = vsel %vm971, %v964, %v968
    %v973 = vand.u32 2147483647, %v948
    %vm974 = vcmp.eq.f32.partialorder %v973, 8.507059e+37
    %v975 = vand.u32 %v948, 2147483648
    %v976 = vor.u32 1.1754944e-38, %v975
    %v977 = vsel %vm974, %v976, %v972
    %v978 = vmul.f32 1.0, %v977
    %v979 = vadd.f32 %v385, %v817
    %v980 = vadd.f32 %v425, %v857
    %v981 = vxor.u32 %v979, 2147483648
    %v982 = vxor.u32 %v980, 2147483648
    %v983 = vmul.f32 %v981, 1.442695
    %v984 = vpow.pop %v983
    %v985 = vmul.f32 %v982, 1.442695
    %v986 = vpow.pop %v985
    %v987 = vadd.f32 %v984, 1.0
    %v988 = vadd.f32 %v986, 1.0
    %v989 = vrcp.pop %v987
    %v990 = vmul.f32 %v987, %v989
    %v991 = vsub.f32 1.0, %v990
    %v992 = vmul.f32 %v989, %v991
    %v993 = vadd.f32 %v989, %v992
    %vm994 = vweird.f32 %v987
    %vm995 = vweird.f32 %v989
    %vm996 = vmor %vm994, %vm995
    %v997 = vsel %vm996, %v989, %v993
    %v998 = vand.u32 2147483647, %v987
    %vm999 = vcmp.eq.f32.partialorder %v998, 8.507059e+37
    %v1000 = vand.u32 %v987, 2147483648
    %v1001 = vor.u32 1.1754944e-38, %v1000
    %v1002 = vsel %vm999, %v1001, %v997
    %v1003 = vmul.f32 1.0, %v1002
    %v1004 = vrcp.pop %v988
    %v1005 = vmul.f32 %v988, %v1004
    %v1006 = vsub.f32 1.0, %v1005
    %v1007 = vmul.f32 %v1004, %v1006
    %v1008 = vadd.f32 %v1004, %v1007
    %vm1009 = vweird.f32 %v988
    %vm1010 = vweird.f32 %v1004
    %vm1011 = vmor %vm1009, %vm1010
    %v1012 = vsel %vm1011, %v1004, %v1008
    %v1013 = vand.u32 2147483647, %v988
    %vm1014 = vcmp.eq.f32.partialorder %v1013, 8.507059e+37
    %v1015 = vand.u32 %v988, 2147483648
    %v1016 = vor.u32 1.1754944e-38, %v1015
    %v1017 = vsel %vm1014, %v1016, %v1012
    %v1018 = vmul.f32 1.0, %v1017
    %v1019 = vld [vmem:[%s5] sm:$0x3]
    %v1021 = vperm.slane %v1019, 0
    %v1022 = vperm.slane %v1019, 1
    %v1025 = vadd.f32 %v897, %v1021
    %v1026 = vadd.f32 %v937, %v1022
    %v1027 = vmul.f32 %v963, %v1025
    %v1028 = vmul.f32 %v978, %v1026
    %v1029 = vadd.f32 %v465, %v1027
    %v1030 = vadd.f32 %v505, %v1028
    %v1031 = vtanh.pop %v1029
    %v1032 = vtanh.pop %v1030
    %v1033 = vsub.f32 1.0, %v1003
    %v1034 = vsub.f32 1.0, %v1018
    %v1035 = vmul.f32 %v1033, %v1031
    %v1036 = vmul.f32 %v1034, %v1032
    %v1037 = vmul.f32 %v1003, %v59
    %v1038 = vmul.f32 %v1018, %v60
    %v1039 = vadd.f32 %v1035, %v1037
    %v1040 = vadd.f32 %v1036, %v1038
    %1041 = vst [vmem:[%s6] sm:$0xff] %v1039
    %1042 = vst [vmem:[%s6 + $0x8] sm:$0xff] %v1040
    %1043 = vst [vmem:[%s7] sm:$0xff] %v1039
    %1044 = vst [vmem:[%s7 + $0x8] sm:$0xff] %v1040
    // Predicated region
    $region34: #{decoder_forward.2} parent=1 // pred_check
      _
    $region35: #{decoder_forward.2} parent=1 // pred_check_branch
      %1046 = sbr.rel (0) target = $region37
    $region36: #{decoder_forward.2} parent=1 // pred_region
      _
    $region37: #{decoder_forward.2} parent=1 // pred_fallthru
      _
    // Predicated region
    $region38: #{decoder_forward.2} parent=1 // pred_check
      _
    $region39: #{decoder_forward.2} parent=1 // pred_check_branch
      %1048 = sbr.rel (0) target = $region41
    $region40: #{decoder_forward.2} parent=1 // pred_region
      _
    $region41: #{decoder_forward.2} parent=1 // pred_fallthru
      _
    // Predicated region
    $region42: #{decoder_forward.2} parent=1 // pred_check
      _
    $region43: #{decoder_forward.2} parent=1 // pred_check_branch
      %1050 = sbr.rel (0) target = $region45
    $region44: #{decoder_forward.2} parent=1 // pred_region
      _
    $region45: #{decoder_forward.2} parent=1 // pred_fallthru
      _
    // Predicated region
    $region46: #{decoder_forward.2} parent=1 // pred_check
      _
    $region47: #{decoder_forward.2} parent=1 // pred_check_branch
      %1052 = sbr.rel (0) target = $region49
    $region48: #{decoder_forward.2} parent=1 // pred_region
      _
    $region49: #{decoder_forward.2} parent=1 // pred_fallthru
      _
    %1053 = vsyncpa [#allocation3], 1
    %1054 = vsyncpa [#allocation5], 1

</llo_original>
